<compile_context>
chip_gen: v6e
topology: v6e:2x2x1
jax: 0.10.0
libtpu: 0.0.40
codegen_flags: <defaults>
</compile_context>

<pallas_src>
import functools

import jax
import jax.numpy as jnp
from jax.experimental import pallas as pl
from jax.experimental.pallas import tpu as pltpu

N_BLOCKS = 2          # number of affine coupling blocks in the synthetic INN
CLAMP = 2.0           # soft clamp on log-scales (FrEIA-style), keeps exp stable


# ----------------------------- Pallas kernel -----------------------------
# Transposed layout: features on sublanes, batch on lanes.
#   x_ref   : (D,  tb)    input tile
#   w1_ref  : (n_sub, H,  d2)   first-layer weights (pre-transposed)
#   b1_ref  : (n_sub, H,  1)
#   w2s_ref : (n_sub, d2, H)    scale-half of second layer, pre-scaled by 1/CLAMP
#   b2s_ref : (n_sub, d2, 1)    (pre-scaled by 1/CLAMP)
#   w2t_ref : (n_sub, d2, H)    shift-half of second layer
#   b2t_ref : (n_sub, d2, 1)
#   z_ref   : (D,  tb)    output tile
#   lj_ref  : (1,  tb)    lane-dense log|det J| row

def ica_inn_kernel(x_ref, w1_ref, b1_ref, w2s_ref, b2s_ref, w2t_ref, b2t_ref,
                   z_ref, lj_ref, *, rev: bool):
    x = x_ref[...].astype(jnp.float32)          # (D, tb)
    d, tb = x.shape
    d2 = d // 2
    x1 = x[:d2, :]                              # sublane split (d2 % 8 == 0)
    x2 = x[d2:, :]
    lj = jnp.zeros((1, tb), jnp.float32)

    def subnet(h, idx):
        # h: (d2, tb) -> log-scale s, shift t, both (d2, tb).
        a = jnp.maximum(
            jnp.dot(w1_ref[idx], h, preferred_element_type=jnp.float32)
            + b1_ref[idx], 0.0)                                        # (H, tb)
        # 1/CLAMP already folded into w2s/b2s.
        s = CLAMP * jnp.tanh(
            jnp.dot(w2s_ref[idx], a, preferred_element_type=jnp.float32)
            + b2s_ref[idx])                                            # (d2, tb)
        t = (jnp.dot(w2t_ref[idx], a, preferred_element_type=jnp.float32)
             + b2t_ref[idx])                                           # (d2, tb)
        return s, t

    if not rev:
        for blk in range(N_BLOCKS):
            s2, t2 = subnet(x2, 2 * blk)
            x1 = x1 * jnp.exp(s2) + t2
            lj = lj + jnp.sum(s2, axis=0, keepdims=True)
            s1, t1 = subnet(x1, 2 * blk + 1)
            x2 = x2 * jnp.exp(s1) + t1
            lj = lj + jnp.sum(s1, axis=0, keepdims=True)
    else:
        for blk in reversed(range(N_BLOCKS)):
            s1, t1 = subnet(x1, 2 * blk + 1)
            x2 = (x2 - t1) * jnp.exp(-s1)
            lj = lj - jnp.sum(s1, axis=0, keepdims=True)
            s2, t2 = subnet(x2, 2 * blk)
            x1 = (x1 - t2) * jnp.exp(-s2)
            lj = lj - jnp.sum(s2, axis=0, keepdims=True)

    # Single contiguous, lane-dense store of the whole tile.
    z_ref[...] = jnp.concatenate([x1, x2], axis=0).astype(z_ref.dtype)
    lj_ref[...] = lj


# ------------------------------ JAX wrapper ------------------------------

def _pick_tb(B: int) -> int:
    """Pick a 128-aligned batch tile; prefer >= 2 grid steps (v7x megacore)."""
    for cand in (1024, 512, 256, 128):
        if B % cand == 0 and B // cand >= 2:
            return cand
    return B  # single full-extent tile (also covers small B)


def build_kernel_params(params):
    """Convert logical-layout params into the kernel's transposed/split layout.

    Logical layout (matches the pure-JAX reference):
      w1: (n_sub, d2, H), b1: (n_sub, 1, H), w2: (n_sub, H, 2*d2), b2: (n_sub, 1, 2*d2)
    """
    w1, b1, w2, b2 = params["w1"], params["b1"], params["w2"], params["b2"]
    n_sub, d2, H = w1.shape
    inv_clamp = 1.0 / CLAMP
    return dict(
        w1=jnp.transpose(w1, (0, 2, 1)).astype(jnp.float32),               # (n_sub, H, d2)
        b1=jnp.transpose(b1, (0, 2, 1)).astype(jnp.float32),               # (n_sub, H, 1)
        w2s=(jnp.transpose(w2[:, :, :d2], (0, 2, 1)) * inv_clamp).astype(jnp.float32),
        b2s=(jnp.transpose(b2[:, :, :d2], (0, 2, 1)) * inv_clamp).astype(jnp.float32),
        w2t=jnp.transpose(w2[:, :, d2:], (0, 2, 1)).astype(jnp.float32),   # (n_sub, d2, H)
        b2t=jnp.transpose(b2[:, :, d2:], (0, 2, 1)).astype(jnp.float32),   # (n_sub, d2, 1)
    )


def ica_inn_pallas(x, kparams, *, rev: bool = False, tb: int | None = None):
    """Runs the invertible network inside a Pallas kernel.

    Returns (z, log_jac_det) with z.shape == x.shape, log_jac_det.shape == (B,).
    """
    B, D = x.shape
    w1 = kparams["w1"]
    n_sub, H, d2 = w1.shape
    assert D == 2 * d2
    if tb is None:
        tb = _pick_tb(B)
    assert B % tb == 0

    # Layout plumbing in XLA: batch onto the 128-lane axis.
    xt = jnp.transpose(x).astype(jnp.float32)          # (D, B)

    kernel = functools.partial(ica_inn_kernel, rev=rev)
    zt, lj = pl.pallas_call(
        kernel,
        out_shape=(jax.ShapeDtypeStruct((D, B), jnp.float32),
                   jax.ShapeDtypeStruct((1, B), jnp.float32)),
        grid_spec=pltpu.PrefetchScalarGridSpec(
            num_scalar_prefetch=0,
            grid=(B // tb,),
            in_specs=[
                pl.BlockSpec((D, tb), lambda i: (0, i)),             # x tile
                pl.BlockSpec((n_sub, H, d2), lambda i: (0, 0, 0)),    # W1 stack
                pl.BlockSpec((n_sub, H, 1), lambda i: (0, 0, 0)),     # b1 stack
                pl.BlockSpec((n_sub, d2, H), lambda i: (0, 0, 0)),    # W2 scale
                pl.BlockSpec((n_sub, d2, 1), lambda i: (0, 0, 0)),    # b2 scale
                pl.BlockSpec((n_sub, d2, H), lambda i: (0, 0, 0)),    # W2 shift
                pl.BlockSpec((n_sub, d2, 1), lambda i: (0, 0, 0)),    # b2 shift
            ],
            out_specs=(
                pl.BlockSpec((D, tb), lambda i: (0, i)),              # z tile
                pl.BlockSpec((1, tb), lambda i: (0, i)),              # logdet row
            ),
        ),
        compiler_params=pltpu.CompilerParams(
            dimension_semantics=("parallel",)),
    )(xt, kparams["w1"], kparams["b1"], kparams["w2s"], kparams["b2s"],
      kparams["w2t"], kparams["b2t"])
    return jnp.transpose(zt), lj[0]


class ICAModelJAX:
    """JAX/Pallas port of ICAModel.  forward(x, rev) -> (z, log_jac_det)."""

    def __init__(self, params, n_classes: int, n_dims: int):
        self.params = params                         # logical layout (for ref)
        self.kparams = build_kernel_params(params)   # kernel layout, built once
        self.n_classes = n_classes
        self.n_dims = n_dims
        # Parameters from the PyTorch __init__ (unused in forward):
        self.mu = jnp.zeros((n_classes, n_dims), jnp.float32)
        self.log_sig = jnp.zeros((n_classes, n_dims), jnp.float32)

    def forward(self, x, rev: bool = False):
        return ica_inn_pallas(x, self.kparams, rev=rev)

    # TODO(synk): init_mu_sig needs a labeled data_loader; not part of forward.


# --------------------------- pure-JAX reference ---------------------------

def _ref_subnet(h, idx, params, d2):
    a = jnp.maximum(h @ params["w1"][idx] + params["b1"][idx], 0.0)
    o = a @ params["w2"][idx] + params["b2"][idx]
    return CLAMP * jnp.tanh(o[:, :d2] / CLAMP), o[:, d2:]


def ref_forward(x, params, rev=False):
    B, D = x.shape
    d2 = D // 2
    x1, x2 = x[:, :d2], x[:, d2:]
    lj = jnp.zeros((B,), jnp.float32)
    if not rev:
        for blk in range(N_BLOCKS):
            s2, t2 = _ref_subnet(x2, 2 * blk, params, d2)
            x1 = x1 * jnp.exp(s2) + t2
            lj = lj + jnp.sum(s2, axis=-1)
            s1, t1 = _ref_subnet(x1, 2 * blk + 1, params, d2)
            x2 = x2 * jnp.exp(s1) + t1
            lj = lj + jnp.sum(s1, axis=-1)
    else:
        for blk in reversed(range(N_BLOCKS)):
            s1, t1 = _ref_subnet(x1, 2 * blk + 1, params, d2)
            x2 = (x2 - t1) * jnp.exp(-s1)
            lj = lj - jnp.sum(s1, axis=-1)
            s2, t2 = _ref_subnet(x2, 2 * blk, params, d2)
            x1 = (x1 - t2) * jnp.exp(-s2)
            lj = lj - jnp.sum(s2, axis=-1)
    return jnp.concatenate([x1, x2], axis=-1), lj


# --------------------------------- main ----------------------------------

if __name__ == "__main__":
    B, D, H = 512, 32, 32         # batch, n_dims, subnet hidden width
    n_classes = 4
    d2 = D // 2
    n_sub = 2 * N_BLOCKS

    key = jax.random.PRNGKey(0)
    k_x, k_w1, k_w2 = jax.random.split(key, 3)
    x = jax.random.normal(k_x, (B, D), jnp.float32)
    params = dict(
        w1=0.2 * jax.random.normal(k_w1, (n_sub, d2, H), jnp.float32),
        b1=jnp.zeros((n_sub, 1, H), jnp.float32),
        w2=0.2 * jax.random.normal(k_w2, (n_sub, H, D), jnp.float32),
        b2=jnp.zeros((n_sub, 1, D), jnp.float32),
    )

    model = ICAModelJAX(params, n_classes=n_classes, n_dims=D)

    # Forward (rev=False)
    z, log_jac = model.forward(x, rev=False)
    z = jax.block_until_ready(z)
    log_jac = jax.block_until_ready(log_jac)

    # Correctness vs pure-JAX reference
    z_ref, lj_ref = ref_forward(x, params, rev=False)
    assert jnp.allclose(z, z_ref, atol=1e-4, rtol=1e-4), "z mismatch"
    assert jnp.allclose(log_jac, lj_ref, atol=1e-4, rtol=1e-4), "logdet mismatch"

    # Invertibility check: forward then reverse recovers the input.
    x_rec, lj_rev = model.forward(z, rev=True)
    x_rec = jax.block_until_ready(x_rec)
    assert jnp.allclose(x_rec, x, atol=1e-3, rtol=1e-3), "inverse mismatch"
    assert jnp.allclose(log_jac + lj_rev, 0.0, atol=1e-3), "logdet sign mismatch"

    print("KERNEL_OK")
</pallas_src>

<mosaic_0001>
module attributes {stable_mosaic.version = 11 : i64} {
  func.func @ica_inn_kernel(%arg0: i32, %arg1: memref<32x256xf32, #tpu.memory_space<vmem>>, %arg2: memref<4x32x16xf32, #tpu.memory_space<vmem>>, %arg3: memref<4x32x1xf32, #tpu.memory_space<vmem>>, %arg4: memref<4x16x32xf32, #tpu.memory_space<vmem>>, %arg5: memref<4x16x1xf32, #tpu.memory_space<vmem>>, %arg6: memref<4x16x32xf32, #tpu.memory_space<vmem>>, %arg7: memref<4x16x1xf32, #tpu.memory_space<vmem>>, %arg8: memref<32x256xf32, #tpu.memory_space<vmem>>, %arg9: memref<1x256xf32, #tpu.memory_space<vmem>>) attributes {dimension_semantics = [#tpu.dimension_semantics<parallel>], iteration_bounds = array<i64: 2>, scalar_prefetch = 0 : i64, scratch_operands = 0 : i64, tpu.core_type = #tpu.core_type<tc>, window_params = [{transform_indices = @transform_0, window_bounds = array<i64: 32, 256>}, {pipeline_mode = #tpu.pipeline_mode<synchronous>, transform_indices = @transform_1, window_bounds = array<i64: 4, 32, 16>}, {pipeline_mode = #tpu.pipeline_mode<synchronous>, transform_indices = @transform_2, window_bounds = array<i64: 4, 32, 1>}, {pipeline_mode = #tpu.pipeline_mode<synchronous>, transform_indices = @transform_3, window_bounds = array<i64: 4, 16, 32>}, {pipeline_mode = #tpu.pipeline_mode<synchronous>, transform_indices = @transform_4, window_bounds = array<i64: 4, 16, 1>}, {pipeline_mode = #tpu.pipeline_mode<synchronous>, transform_indices = @transform_5, window_bounds = array<i64: 4, 16, 32>}, {pipeline_mode = #tpu.pipeline_mode<synchronous>, transform_indices = @transform_6, window_bounds = array<i64: 4, 16, 1>}, {transform_indices = @transform_7, window_bounds = array<i64: 32, 256>}, {transform_indices = @transform_8, window_bounds = array<i64: 1, 256>}]} {
    %c0 = arith.constant 0 : index
    %c0_0 = arith.constant 0 : index
    %0 = vector.load %arg1[%c0, %c0_0] : memref<32x256xf32, #tpu.memory_space<vmem>>, vector<32x256xf32>
    %1 = vector.extract_strided_slice %0 {offsets = [0, 0], sizes = [16, 256], strides = [1, 1]} : vector<32x256xf32> to vector<16x256xf32>
    %2 = vector.extract_strided_slice %0 {offsets = [16, 0], sizes = [16, 256], strides = [1, 1]} : vector<32x256xf32> to vector<16x256xf32>
    %cst = arith.constant 0.000000e+00 : f32
    %3 = vector.broadcast %cst : f32 to vector<1x256xf32>
    %c0_1 = arith.constant 0 : index
    %c0_2 = arith.constant 0 : index
    %c0_3 = arith.constant 0 : index
    %4 = vector.load %arg2[%c0_1, %c0_2, %c0_3] : memref<4x32x16xf32, #tpu.memory_space<vmem>>, vector<1x32x16xf32>
    %5 = vector.shape_cast %4 : vector<1x32x16xf32> to vector<32x16xf32>
    %cst_4 = arith.constant dense<0.000000e+00> : vector<32x256xf32>
    %6 = tpu.matmul %5, %2, %cst_4 {dimension_numbers = #tpu.dot_dimension_numbers<[1], [0], [0], [1], [0, 0, 1, 1], [], []>} : vector<32x16xf32>, vector<16x256xf32>, vector<32x256xf32> -> vector<32x256xf32>
    %c0_5 = arith.constant 0 : index
    %c0_6 = arith.constant 0 : index
    %c0_7 = arith.constant 0 : index
    %7 = vector.load %arg3[%c0_5, %c0_6, %c0_7] : memref<4x32x1xf32, #tpu.memory_space<vmem>>, vector<1x32x1xf32>
    %8 = vector.shape_cast %7 : vector<1x32x1xf32> to vector<32x1xf32>
    %9 = vector.broadcast %8 : vector<32x1xf32> to vector<32x256xf32>
    %10 = arith.addf %6, %9 : vector<32x256xf32>
    %cst_8 = arith.constant 0.000000e+00 : f32
    %11 = vector.broadcast %cst_8 : f32 to vector<32x256xf32>
    %12 = arith.maximumf %10, %11 : vector<32x256xf32>
    %c0_9 = arith.constant 0 : index
    %c0_10 = arith.constant 0 : index
    %c0_11 = arith.constant 0 : index
    %13 = vector.load %arg4[%c0_9, %c0_10, %c0_11] : memref<4x16x32xf32, #tpu.memory_space<vmem>>, vector<1x16x32xf32>
    %14 = vector.shape_cast %13 : vector<1x16x32xf32> to vector<16x32xf32>
    %cst_12 = arith.constant dense<0.000000e+00> : vector<16x256xf32>
    %15 = tpu.matmul %14, %12, %cst_12 {dimension_numbers = #tpu.dot_dimension_numbers<[1], [0], [0], [1], [0, 0, 1, 1], [], []>} : vector<16x32xf32>, vector<32x256xf32>, vector<16x256xf32> -> vector<16x256xf32>
    %c0_13 = arith.constant 0 : index
    %c0_14 = arith.constant 0 : index
    %c0_15 = arith.constant 0 : index
    %16 = vector.load %arg5[%c0_13, %c0_14, %c0_15] : memref<4x16x1xf32, #tpu.memory_space<vmem>>, vector<1x16x1xf32>
    %17 = vector.shape_cast %16 : vector<1x16x1xf32> to vector<16x1xf32>
    %18 = vector.broadcast %17 : vector<16x1xf32> to vector<16x256xf32>
    %19 = arith.addf %15, %18 : vector<16x256xf32>
    %20 = math.tanh %19 : vector<16x256xf32>
    %cst_16 = arith.constant 2.000000e+00 : f32
    %21 = vector.broadcast %cst_16 : f32 to vector<16x256xf32>
    %22 = arith.mulf %21, %20 : vector<16x256xf32>
    %c0_17 = arith.constant 0 : index
    %c0_18 = arith.constant 0 : index
    %c0_19 = arith.constant 0 : index
    %23 = vector.load %arg6[%c0_17, %c0_18, %c0_19] : memref<4x16x32xf32, #tpu.memory_space<vmem>>, vector<1x16x32xf32>
    %24 = vector.shape_cast %23 : vector<1x16x32xf32> to vector<16x32xf32>
    %cst_20 = arith.constant dense<0.000000e+00> : vector<16x256xf32>
    %25 = tpu.matmul %24, %12, %cst_20 {dimension_numbers = #tpu.dot_dimension_numbers<[1], [0], [0], [1], [0, 0, 1, 1], [], []>} : vector<16x32xf32>, vector<32x256xf32>, vector<16x256xf32> -> vector<16x256xf32>
    %c0_21 = arith.constant 0 : index
    %c0_22 = arith.constant 0 : index
    %c0_23 = arith.constant 0 : index
    %26 = vector.load %arg7[%c0_21, %c0_22, %c0_23] : memref<4x16x1xf32, #tpu.memory_space<vmem>>, vector<1x16x1xf32>
    %27 = vector.shape_cast %26 : vector<1x16x1xf32> to vector<16x1xf32>
    %28 = vector.broadcast %27 : vector<16x1xf32> to vector<16x256xf32>
    %29 = arith.addf %25, %28 : vector<16x256xf32>
    %30 = math.exp %22 : vector<16x256xf32>
    %31 = arith.mulf %1, %30 : vector<16x256xf32>
    %32 = arith.addf %31, %29 : vector<16x256xf32>
    %cst_24 = arith.constant dense<0.000000e+00> : vector<256xf32>
    %33 = vector.multi_reduction <add>, %22, %cst_24 [0] : vector<16x256xf32> to vector<256xf32>
    %34 = vector.shape_cast %33 : vector<256xf32> to vector<1x256xf32>
    %35 = arith.addf %3, %34 : vector<1x256xf32>
    %c1 = arith.constant 1 : index
    %c0_25 = arith.constant 0 : index
    %c0_26 = arith.constant 0 : index
    %36 = vector.load %arg2[%c1, %c0_25, %c0_26] : memref<4x32x16xf32, #tpu.memory_space<vmem>>, vector<1x32x16xf32>
    %37 = vector.shape_cast %36 : vector<1x32x16xf32> to vector<32x16xf32>
    %cst_27 = arith.constant dense<0.000000e+00> : vector<32x256xf32>
    %38 = tpu.matmul %37, %32, %cst_27 {dimension_numbers = #tpu.dot_dimension_numbers<[1], [0], [0], [1], [0, 0, 1, 1], [], []>} : vector<32x16xf32>, vector<16x256xf32>, vector<32x256xf32> -> vector<32x256xf32>
    %c1_28 = arith.constant 1 : index
    %c0_29 = arith.constant 0 : index
    %c0_30 = arith.constant 0 : index
    %39 = vector.load %arg3[%c1_28, %c0_29, %c0_30] : memref<4x32x1xf32, #tpu.memory_space<vmem>>, vector<1x32x1xf32>
    %40 = vector.shape_cast %39 : vector<1x32x1xf32> to vector<32x1xf32>
    %41 = vector.broadcast %40 : vector<32x1xf32> to vector<32x256xf32>
    %42 = arith.addf %38, %41 : vector<32x256xf32>
    %cst_31 = arith.constant 0.000000e+00 : f32
    %43 = vector.broadcast %cst_31 : f32 to vector<32x256xf32>
    %44 = arith.maximumf %42, %43 : vector<32x256xf32>
    %c1_32 = arith.constant 1 : index
    %c0_33 = arith.constant 0 : index
    %c0_34 = arith.constant 0 : index
    %45 = vector.load %arg4[%c1_32, %c0_33, %c0_34] : memref<4x16x32xf32, #tpu.memory_space<vmem>>, vector<1x16x32xf32>
    %46 = vector.shape_cast %45 : vector<1x16x32xf32> to vector<16x32xf32>
    %cst_35 = arith.constant dense<0.000000e+00> : vector<16x256xf32>
    %47 = tpu.matmul %46, %44, %cst_35 {dimension_numbers = #tpu.dot_dimension_numbers<[1], [0], [0], [1], [0, 0, 1, 1], [], []>} : vector<16x32xf32>, vector<32x256xf32>, vector<16x256xf32> -> vector<16x256xf32>
    %c1_36 = arith.constant 1 : index
    %c0_37 = arith.constant 0 : index
    %c0_38 = arith.constant 0 : index
    %48 = vector.load %arg5[%c1_36, %c0_37, %c0_38] : memref<4x16x1xf32, #tpu.memory_space<vmem>>, vector<1x16x1xf32>
    %49 = vector.shape_cast %48 : vector<1x16x1xf32> to vector<16x1xf32>
    %50 = vector.broadcast %49 : vector<16x1xf32> to vector<16x256xf32>
    %51 = arith.addf %47, %50 : vector<16x256xf32>
    %52 = math.tanh %51 : vector<16x256xf32>
    %cst_39 = arith.constant 2.000000e+00 : f32
    %53 = vector.broadcast %cst_39 : f32 to vector<16x256xf32>
    %54 = arith.mulf %53, %52 : vector<16x256xf32>
    %c1_40 = arith.constant 1 : index
    %c0_41 = arith.constant 0 : index
    %c0_42 = arith.constant 0 : index
    %55 = vector.load %arg6[%c1_40, %c0_41, %c0_42] : memref<4x16x32xf32, #tpu.memory_space<vmem>>, vector<1x16x32xf32>
    %56 = vector.shape_cast %55 : vector<1x16x32xf32> to vector<16x32xf32>
    %cst_43 = arith.constant dense<0.000000e+00> : vector<16x256xf32>
    %57 = tpu.matmul %56, %44, %cst_43 {dimension_numbers = #tpu.dot_dimension_numbers<[1], [0], [0], [1], [0, 0, 1, 1], [], []>} : vector<16x32xf32>, vector<32x256xf32>, vector<16x256xf32> -> vector<16x256xf32>
    %c1_44 = arith.constant 1 : index
    %c0_45 = arith.constant 0 : index
    %c0_46 = arith.constant 0 : index
    %58 = vector.load %arg7[%c1_44, %c0_45, %c0_46] : memref<4x16x1xf32, #tpu.memory_space<vmem>>, vector<1x16x1xf32>
    %59 = vector.shape_cast %58 : vector<1x16x1xf32> to vector<16x1xf32>
    %60 = vector.broadcast %59 : vector<16x1xf32> to vector<16x256xf32>
    %61 = arith.addf %57, %60 : vector<16x256xf32>
    %62 = math.exp %54 : vector<16x256xf32>
    %63 = arith.mulf %2, %62 : vector<16x256xf32>
    %64 = arith.addf %63, %61 : vector<16x256xf32>
    %cst_47 = arith.constant dense<0.000000e+00> : vector<256xf32>
    %65 = vector.multi_reduction <add>, %54, %cst_47 [0] : vector<16x256xf32> to vector<256xf32>
    %66 = vector.shape_cast %65 : vector<256xf32> to vector<1x256xf32>
    %67 = arith.addf %35, %66 : vector<1x256xf32>
    %c2 = arith.constant 2 : index
    %c0_48 = arith.constant 0 : index
    %c0_49 = arith.constant 0 : index
    %68 = vector.load %arg2[%c2, %c0_48, %c0_49] : memref<4x32x16xf32, #tpu.memory_space<vmem>>, vector<1x32x16xf32>
    %69 = vector.shape_cast %68 : vector<1x32x16xf32> to vector<32x16xf32>
    %cst_50 = arith.constant dense<0.000000e+00> : vector<32x256xf32>
    %70 = tpu.matmul %69, %64, %cst_50 {dimension_numbers = #tpu.dot_dimension_numbers<[1], [0], [0], [1], [0, 0, 1, 1], [], []>} : vector<32x16xf32>, vector<16x256xf32>, vector<32x256xf32> -> vector<32x256xf32>
    %c2_51 = arith.constant 2 : index
    %c0_52 = arith.constant 0 : index
    %c0_53 = arith.constant 0 : index
    %71 = vector.load %arg3[%c2_51, %c0_52, %c0_53] : memref<4x32x1xf32, #tpu.memory_space<vmem>>, vector<1x32x1xf32>
    %72 = vector.shape_cast %71 : vector<1x32x1xf32> to vector<32x1xf32>
    %73 = vector.broadcast %72 : vector<32x1xf32> to vector<32x256xf32>
    %74 = arith.addf %70, %73 : vector<32x256xf32>
    %cst_54 = arith.constant 0.000000e+00 : f32
    %75 = vector.broadcast %cst_54 : f32 to vector<32x256xf32>
    %76 = arith.maximumf %74, %75 : vector<32x256xf32>
    %c2_55 = arith.constant 2 : index
    %c0_56 = arith.constant 0 : index
    %c0_57 = arith.constant 0 : index
    %77 = vector.load %arg4[%c2_55, %c0_56, %c0_57] : memref<4x16x32xf32, #tpu.memory_space<vmem>>, vector<1x16x32xf32>
    %78 = vector.shape_cast %77 : vector<1x16x32xf32> to vector<16x32xf32>
    %cst_58 = arith.constant dense<0.000000e+00> : vector<16x256xf32>
    %79 = tpu.matmul %78, %76, %cst_58 {dimension_numbers = #tpu.dot_dimension_numbers<[1], [0], [0], [1], [0, 0, 1, 1], [], []>} : vector<16x32xf32>, vector<32x256xf32>, vector<16x256xf32> -> vector<16x256xf32>
    %c2_59 = arith.constant 2 : index
    %c0_60 = arith.constant 0 : index
    %c0_61 = arith.constant 0 : index
    %80 = vector.load %arg5[%c2_59, %c0_60, %c0_61] : memref<4x16x1xf32, #tpu.memory_space<vmem>>, vector<1x16x1xf32>
    %81 = vector.shape_cast %80 : vector<1x16x1xf32> to vector<16x1xf32>
    %82 = vector.broadcast %81 : vector<16x1xf32> to vector<16x256xf32>
    %83 = arith.addf %79, %82 : vector<16x256xf32>
    %84 = math.tanh %83 : vector<16x256xf32>
    %cst_62 = arith.constant 2.000000e+00 : f32
    %85 = vector.broadcast %cst_62 : f32 to vector<16x256xf32>
    %86 = arith.mulf %85, %84 : vector<16x256xf32>
    %c2_63 = arith.constant 2 : index
    %c0_64 = arith.constant 0 : index
    %c0_65 = arith.constant 0 : index
    %87 = vector.load %arg6[%c2_63, %c0_64, %c0_65] : memref<4x16x32xf32, #tpu.memory_space<vmem>>, vector<1x16x32xf32>
    %88 = vector.shape_cast %87 : vector<1x16x32xf32> to vector<16x32xf32>
    %cst_66 = arith.constant dense<0.000000e+00> : vector<16x256xf32>
    %89 = tpu.matmul %88, %76, %cst_66 {dimension_numbers = #tpu.dot_dimension_numbers<[1], [0], [0], [1], [0, 0, 1, 1], [], []>} : vector<16x32xf32>, vector<32x256xf32>, vector<16x256xf32> -> vector<16x256xf32>
    %c2_67 = arith.constant 2 : index
    %c0_68 = arith.constant 0 : index
    %c0_69 = arith.constant 0 : index
    %90 = vector.load %arg7[%c2_67, %c0_68, %c0_69] : memref<4x16x1xf32, #tpu.memory_space<vmem>>, vector<1x16x1xf32>
    %91 = vector.shape_cast %90 : vector<1x16x1xf32> to vector<16x1xf32>
    %92 = vector.broadcast %91 : vector<16x1xf32> to vector<16x256xf32>
    %93 = arith.addf %89, %92 : vector<16x256xf32>
    %94 = math.exp %86 : vector<16x256xf32>
    %95 = arith.mulf %32, %94 : vector<16x256xf32>
    %96 = arith.addf %95, %93 : vector<16x256xf32>
    %cst_70 = arith.constant dense<0.000000e+00> : vector<256xf32>
    %97 = vector.multi_reduction <add>, %86, %cst_70 [0] : vector<16x256xf32> to vector<256xf32>
    %98 = vector.shape_cast %97 : vector<256xf32> to vector<1x256xf32>
    %99 = arith.addf %67, %98 : vector<1x256xf32>
    %c3 = arith.constant 3 : index
    %c0_71 = arith.constant 0 : index
    %c0_72 = arith.constant 0 : index
    %100 = vector.load %arg2[%c3, %c0_71, %c0_72] : memref<4x32x16xf32, #tpu.memory_space<vmem>>, vector<1x32x16xf32>
    %101 = vector.shape_cast %100 : vector<1x32x16xf32> to vector<32x16xf32>
    %cst_73 = arith.constant dense<0.000000e+00> : vector<32x256xf32>
    %102 = tpu.matmul %101, %96, %cst_73 {dimension_numbers = #tpu.dot_dimension_numbers<[1], [0], [0], [1], [0, 0, 1, 1], [], []>} : vector<32x16xf32>, vector<16x256xf32>, vector<32x256xf32> -> vector<32x256xf32>
    %c3_74 = arith.constant 3 : index
    %c0_75 = arith.constant 0 : index
    %c0_76 = arith.constant 0 : index
    %103 = vector.load %arg3[%c3_74, %c0_75, %c0_76] : memref<4x32x1xf32, #tpu.memory_space<vmem>>, vector<1x32x1xf32>
    %104 = vector.shape_cast %103 : vector<1x32x1xf32> to vector<32x1xf32>
    %105 = vector.broadcast %104 : vector<32x1xf32> to vector<32x256xf32>
    %106 = arith.addf %102, %105 : vector<32x256xf32>
    %cst_77 = arith.constant 0.000000e+00 : f32
    %107 = vector.broadcast %cst_77 : f32 to vector<32x256xf32>
    %108 = arith.maximumf %106, %107 : vector<32x256xf32>
    %c3_78 = arith.constant 3 : index
    %c0_79 = arith.constant 0 : index
    %c0_80 = arith.constant 0 : index
    %109 = vector.load %arg4[%c3_78, %c0_79, %c0_80] : memref<4x16x32xf32, #tpu.memory_space<vmem>>, vector<1x16x32xf32>
    %110 = vector.shape_cast %109 : vector<1x16x32xf32> to vector<16x32xf32>
    %cst_81 = arith.constant dense<0.000000e+00> : vector<16x256xf32>
    %111 = tpu.matmul %110, %108, %cst_81 {dimension_numbers = #tpu.dot_dimension_numbers<[1], [0], [0], [1], [0, 0, 1, 1], [], []>} : vector<16x32xf32>, vector<32x256xf32>, vector<16x256xf32> -> vector<16x256xf32>
    %c3_82 = arith.constant 3 : index
    %c0_83 = arith.constant 0 : index
    %c0_84 = arith.constant 0 : index
    %112 = vector.load %arg5[%c3_82, %c0_83, %c0_84] : memref<4x16x1xf32, #tpu.memory_space<vmem>>, vector<1x16x1xf32>
    %113 = vector.shape_cast %112 : vector<1x16x1xf32> to vector<16x1xf32>
    %114 = vector.broadcast %113 : vector<16x1xf32> to vector<16x256xf32>
    %115 = arith.addf %111, %114 : vector<16x256xf32>
    %116 = math.tanh %115 : vector<16x256xf32>
    %cst_85 = arith.constant 2.000000e+00 : f32
    %117 = vector.broadcast %cst_85 : f32 to vector<16x256xf32>
    %118 = arith.mulf %117, %116 : vector<16x256xf32>
    %c3_86 = arith.constant 3 : index
    %c0_87 = arith.constant 0 : index
    %c0_88 = arith.constant 0 : index
    %119 = vector.load %arg6[%c3_86, %c0_87, %c0_88] : memref<4x16x32xf32, #tpu.memory_space<vmem>>, vector<1x16x32xf32>
    %120 = vector.shape_cast %119 : vector<1x16x32xf32> to vector<16x32xf32>
    %cst_89 = arith.constant dense<0.000000e+00> : vector<16x256xf32>
    %121 = tpu.matmul %120, %108, %cst_89 {dimension_numbers = #tpu.dot_dimension_numbers<[1], [0], [0], [1], [0, 0, 1, 1], [], []>} : vector<16x32xf32>, vector<32x256xf32>, vector<16x256xf32> -> vector<16x256xf32>
    %c3_90 = arith.constant 3 : index
    %c0_91 = arith.constant 0 : index
    %c0_92 = arith.constant 0 : index
    %122 = vector.load %arg7[%c3_90, %c0_91, %c0_92] : memref<4x16x1xf32, #tpu.memory_space<vmem>>, vector<1x16x1xf32>
    %123 = vector.shape_cast %122 : vector<1x16x1xf32> to vector<16x1xf32>
    %124 = vector.broadcast %123 : vector<16x1xf32> to vector<16x256xf32>
    %125 = arith.addf %121, %124 : vector<16x256xf32>
    %126 = math.exp %118 : vector<16x256xf32>
    %127 = arith.mulf %64, %126 : vector<16x256xf32>
    %128 = arith.addf %127, %125 : vector<16x256xf32>
    %cst_93 = arith.constant dense<0.000000e+00> : vector<256xf32>
    %129 = vector.multi_reduction <add>, %118, %cst_93 [0] : vector<16x256xf32> to vector<256xf32>
    %130 = vector.shape_cast %129 : vector<256xf32> to vector<1x256xf32>
    %131 = arith.addf %99, %130 : vector<1x256xf32>
    %132 = tpu.concatenate %96, %128 in 0 : vector<16x256xf32>, vector<16x256xf32> -> vector<32x256xf32>
    %c0_94 = arith.constant 0 : index
    %c0_95 = arith.constant 0 : index
    %133 = vector.load %arg8[%c0_94, %c0_95] : memref<32x256xf32, #tpu.memory_space<vmem>>, vector<32x256xf32>
    tpu.vector_store %arg8[%c0_94, %c0_95], %132 {strides = array<i32>} : memref<32x256xf32, #tpu.memory_space<vmem>>, vector<32x256xf32>,
    %c0_96 = arith.constant 0 : index
    %c0_97 = arith.constant 0 : index
    %134 = vector.load %arg9[%c0_96, %c0_97] : memref<1x256xf32, #tpu.memory_space<vmem>>, vector<1x256xf32>
    tpu.vector_store %arg9[%c0_96, %c0_97], %131 {strides = array<i32>} : memref<1x256xf32, #tpu.memory_space<vmem>>, vector<1x256xf32>,
    return
  }
  func.func @transform_0(%arg0: i32) -> (i32, i32) {
    %c0_i32 = arith.constant 0 : i32
    %c0_i32_0 = arith.constant 0 : i32
    return %c0_i32, %arg0 : i32, i32
  }
  func.func @transform_1(%arg0: i32) -> (i32, i32, i32) {
    %c0_i32 = arith.constant 0 : i32
    %c0_i32_0 = arith.constant 0 : i32
    %c0_i32_1 = arith.constant 0 : i32
    %c0_i32_2 = arith.constant 0 : i32
    return %c0_i32, %c0_i32_0, %c0_i32_1 : i32, i32, i32
  }
  func.func @transform_2(%arg0: i32) -> (i32, i32, i32) {
    %c0_i32 = arith.constant 0 : i32
    %c0_i32_0 = arith.constant 0 : i32
    %c0_i32_1 = arith.constant 0 : i32
    %c0_i32_2 = arith.constant 0 : i32
    return %c0_i32, %c0_i32_0, %c0_i32_1 : i32, i32, i32
  }
  func.func @transform_3(%arg0: i32) -> (i32, i32, i32) {
    %c0_i32 = arith.constant 0 : i32
    %c0_i32_0 = arith.constant 0 : i32
    %c0_i32_1 = arith.constant 0 : i32
    %c0_i32_2 = arith.constant 0 : i32
    return %c0_i32, %c0_i32_0, %c0_i32_1 : i32, i32, i32
  }
  func.func @transform_4(%arg0: i32) -> (i32, i32, i32) {
    %c0_i32 = arith.constant 0 : i32
    %c0_i32_0 = arith.constant 0 : i32
    %c0_i32_1 = arith.constant 0 : i32
    %c0_i32_2 = arith.constant 0 : i32
    return %c0_i32, %c0_i32_0, %c0_i32_1 : i32, i32, i32
  }
  func.func @transform_5(%arg0: i32) -> (i32, i32, i32) {
    %c0_i32 = arith.constant 0 : i32
    %c0_i32_0 = arith.constant 0 : i32
    %c0_i32_1 = arith.constant 0 : i32
    %c0_i32_2 = arith.constant 0 : i32
    return %c0_i32, %c0_i32_0, %c0_i32_1 : i32, i32, i32
  }
  func.func @transform_6(%arg0: i32) -> (i32, i32, i32) {
    %c0_i32 = arith.constant 0 : i32
    %c0_i32_0 = arith.constant 0 : i32
    %c0_i32_1 = arith.constant 0 : i32
    %c0_i32_2 = arith.constant 0 : i32
    return %c0_i32, %c0_i32_0, %c0_i32_1 : i32, i32, i32
  }
  func.func @transform_7(%arg0: i32) -> (i32, i32) {
    %c0_i32 = arith.constant 0 : i32
    %c0_i32_0 = arith.constant 0 : i32
    return %c0_i32, %arg0 : i32, i32
  }
  func.func @transform_8(%arg0: i32) -> (i32, i32) {
    %c0_i32 = arith.constant 0 : i32
    %c0_i32_0 = arith.constant 0 : i32
    return %c0_i32, %arg0 : i32, i32
  }
}

</mosaic_0001>

<llo_original>
// kernel: tpu_custom_call.1
$region0: #{tpu_custom_call.1}
  #allocation0 [shape = 'u32[]', space=smem, size = 0x4, offset = 0x4, fixed_abs, tag = 'smem constant byte address 0x4 - core index']
  #allocation1 [shape = 'u32[144,128]{1,0:T(1,128)}', space=vmem, size = 0x12000, scoped, tag = 'internal scratch']
  %s0 = inlined_call_operand.vmem [shape: f32[32,512], index: 0, kind: input, shape index: {}]
  %s1 = inlined_call_operand.vmem [shape: f32[4,32,16], index: 1, kind: input, shape index: {}]
  %s2 = inlined_call_operand.vmem [shape: f32[4,32,1], index: 2, kind: input, shape index: {}]
  %s3 = inlined_call_operand.vmem [shape: f32[4,16,32], index: 3, kind: input, shape index: {}]
  %s4 = inlined_call_operand.vmem [shape: f32[4,16,1], index: 4, kind: input, shape index: {}]
  %s5 = inlined_call_operand.vmem [shape: f32[4,16,32], index: 5, kind: input, shape index: {}]
  %s6 = inlined_call_operand.vmem [shape: f32[4,16,1], index: 6, kind: input, shape index: {}]
  %s7 = inlined_call_operand.hbm [shape: f32[32,512], index: 7, kind: output, shape index: {0}]
  %s8 = inlined_call_operand.hbm [shape: f32[1,512], index: 8, kind: output, shape index: {1}]
  %9 = xla_tuple %s7, %s8
  %s10 = sld [smem:[#allocation0]]
  $region92: #{tpu_custom_call.1} parent=0
    _
  %s12 = ssub.s32 1, %s10
  %s13 = scalar_select 0, %s12, %s10
  $region1: #{tpu_custom_call.1} parent=0
    #allocation2 [shape = 'u8[65536]{0}', space=vmem, size = 0x10000, scoped, tag = 'input window, operand 0']
    #allocation3 [shape = 'u8[65536]{0}', space=vmem, size = 0x10000, scoped, tag = 'output window, operand 0']
    #allocation4 [shape = 's32[2]{0}', space=sflag, size = 0x8, scoped, tag = 'scoped memory for tpu_custom_call.1']
    #allocation5 [shape = 'u8[2048]{0}', space=vmem, size = 0x800, scoped, tag = 'output window, operand 1']
    #allocation6 [shape = 's32[2]{0}', space=sflag, size = 0x8, scoped, tag = 'scoped memory for tpu_custom_call.1']
    %14 = vsyncpa [#allocation4], 0
    %s15 = scalar_lea.sflag [#allocation4], 1
    %16 = vsyncpa %s15, 0
    %17 = vsyncpa [#allocation6], 0
    %s18 = scalar_lea.sflag [#allocation6], 1
    %19 = vsyncpa %s18, 0
    loop: start=0, step=1, limit=4
    $region2: #{tpu_custom_call.1} parent=1 // loop_pre_header
      _
    $region3: #{tpu_custom_call.1} parent=1 // loop_header
      %s21 = sphi 0, %s25
      %p22 = scmp.ge.s32.totalorder %s21, 4
      %s31 = sphi 0, %s33
      %s34 = sphi 0, %s31
      %s35 = sphi 0, %s34
      %s51 = sphi 0, %s35
      %s55 = sphi 0, %s55
      %s57 = sphi 0, %s55
      %s58 = sphi 0, %s57
      %s72 = sphi 0, %s58
      %s76 = sphi 0, %s76
      %s78 = sphi 0, %s76
      %s79 = sphi 0, %s78
      %s93 = sphi 0, %s79
      %s97 = sphi 0, %s97
      %s99 = sphi 0, %s97
      %s100 = sphi 0, %s99
      %s114 = sphi 0, %s100
      %s118 = sphi 0, %s118
      %s120 = sphi 0, %s118
      %s121 = sphi 0, %s120
      %s135 = sphi 0, %s121
      %s139 = sphi 0, %s139
      %s141 = sphi 0, %s139
      %s142 = sphi 0, %s141
      %s156 = sphi 0, %s142
      %s160 = sphi 0, %s160
      %s162 = sphi 0, %s160
      %s163 = sphi 0, %s162
      %s177 = sphi 0, %s163
      %s183 = sphi 0, %s185
      %s186 = sphi 0, %s183
      %s187 = sphi 0, %s186
      %s203 = sphi 0, %s187
      %s209 = sphi 0, %s211
      %s212 = sphi 0, %s209
      %s213 = sphi 0, %s212
      %s229 = sphi 0, %s213
    $region4: #{tpu_custom_call.1} parent=1 // loop_header_branch
      %24 = sbr.rel (%p22) target = $region8
    $region5: #{tpu_custom_call.1} parent=1 // loop_body
      %s26 = ssub.s32 %s21, 1
      %s27 = ssub.s32 %s21, 2
      %s28 = sadd.s32 %s21, 1
      %s29 = ssub.s32 %s21, %s28
      %p30 = scmp.eq.s32.totalorder %s29, 0
      %s32 = sadd.s32 %s31, 1
      %s33 = scalar_select %p30, %s31, %s32
      %p36 = pneg %p30
      %p37 = scmp.eq.s32.totalorder %s21, 1
      %p38 = por %p36, %p37
      %p39 = scmp.ne.s32.totalorder %s31, %s34
      %p40 = scmp.eq.s32.totalorder %s21, 0
      %p41 = por %p39, %p40
      %p42 = scmp.ne.s32.totalorder %s31, %s34
      %p43 = scmp.eq.s32.totalorder %s26, 1
      %p44 = por %p42, %p43
      %p45 = scmp.ne.s32.totalorder %s34, %s35
      %p46 = scmp.eq.s32.totalorder %s26, 0
      %p47 = por %p45, %p46
      %p48 = scmp.ne.s32.totalorder %s34, %s35
      %p49 = scmp.eq.s32.totalorder %s27, 1
      %p50 = por %p48, %p49
      %p52 = scmp.ne.s32.totalorder %s35, %s51
      %p53 = scmp.eq.s32.totalorder %s27, 0
      %p54 = por %p52, %p53
      %s56 = sadd.s32 %s55, 1
      %p59 = scmp.eq.s32.totalorder %s21, 1
      %p60 = scmp.ne.s32.totalorder %s55, %s57
      %p61 = scmp.eq.s32.totalorder %s21, 0
      %p62 = por %p60, %p61
      %p63 = scmp.ne.s32.totalorder %s55, %s57
      %p64 = scmp.eq.s32.totalorder %s26, 1
      %p65 = por %p63, %p64
      %p66 = scmp.ne.s32.totalorder %s57, %s58
      %p67 = scmp.eq.s32.totalorder %s26, 0
      %p68 = por %p66, %p67
      %p69 = scmp.ne.s32.totalorder %s57, %s58
      %p70 = scmp.eq.s32.totalorder %s27, 1
      %p71 = por %p69, %p70
      %p73 = scmp.ne.s32.totalorder %s58, %s72
      %p74 = scmp.eq.s32.totalorder %s27, 0
      %p75 = por %p73, %p74
      %s77 = sadd.s32 %s76, 1
      %p80 = scmp.eq.s32.totalorder %s21, 1
      %p81 = scmp.ne.s32.totalorder %s76, %s78
      %p82 = scmp.eq.s32.totalorder %s21, 0
      %p83 = por %p81, %p82
      %p84 = scmp.ne.s32.totalorder %s76, %s78
      %p85 = scmp.eq.s32.totalorder %s26, 1
      %p86 = por %p84, %p85
      %p87 = scmp.ne.s32.totalorder %s78, %s79
      %p88 = scmp.eq.s32.totalorder %s26, 0
      %p89 = por %p87, %p88
      %p90 = scmp.ne.s32.totalorder %s78, %s79
      %p91 = scmp.eq.s32.totalorder %s27, 1
      %p92 = por %p90, %p91
      %p94 = scmp.ne.s32.totalorder %s79, %s93
      %p95 = scmp.eq.s32.totalorder %s27, 0
      %p96 = por %p94, %p95
      %s98 = sadd.s32 %s97, 1
      %p101 = scmp.eq.s32.totalorder %s21, 1
      %p102 = scmp.ne.s32.totalorder %s97, %s99
      %p103 = scmp.eq.s32.totalorder %s21, 0
      %p104 = por %p102, %p103
      %p105 = scmp.ne.s32.totalorder %s97, %s99
      %p106 = scmp.eq.s32.totalorder %s26, 1
      %p107 = por %p105, %p106
      %p108 = scmp.ne.s32.totalorder %s99, %s100
      %p109 = scmp.eq.s32.totalorder %s26, 0
      %p110 = por %p108, %p109
      %p111 = scmp.ne.s32.totalorder %s99, %s100
      %p112 = scmp.eq.s32.totalorder %s27, 1
      %p113 = por %p111, %p112
      %p115 = scmp.ne.s32.totalorder %s100, %s114
      %p116 = scmp.eq.s32.totalorder %s27, 0
      %p117 = por %p115, %p116
      %s119 = sadd.s32 %s118, 1
      %p122 = scmp.eq.s32.totalorder %s21, 1
      %p123 = scmp.ne.s32.totalorder %s118, %s120
      %p124 = scmp.eq.s32.totalorder %s21, 0
      %p125 = por %p123, %p124
      %p126 = scmp.ne.s32.totalorder %s118, %s120
      %p127 = scmp.eq.s32.totalorder %s26, 1
      %p128 = por %p126, %p127
      %p129 = scmp.ne.s32.totalorder %s120, %s121
      %p130 = scmp.eq.s32.totalorder %s26, 0
      %p131 = por %p129, %p130
      %p132 = scmp.ne.s32.totalorder %s120, %s121
      %p133 = scmp.eq.s32.totalorder %s27, 1
      %p134 = por %p132, %p133
      %p136 = scmp.ne.s32.totalorder %s121, %s135
      %p137 = scmp.eq.s32.totalorder %s27, 0
      %p138 = por %p136, %p137
      %s140 = sadd.s32 %s139, 1
      %p143 = scmp.eq.s32.totalorder %s21, 1
      %p144 = scmp.ne.s32.totalorder %s139, %s141
      %p145 = scmp.eq.s32.totalorder %s21, 0
      %p146 = por %p144, %p145
      %p147 = scmp.ne.s32.totalorder %s139, %s141
      %p148 = scmp.eq.s32.totalorder %s26, 1
      %p149 = por %p147, %p148
      %p150 = scmp.ne.s32.totalorder %s141, %s142
      %p151 = scmp.eq.s32.totalorder %s26, 0
      %p152 = por %p150, %p151
      %p153 = scmp.ne.s32.totalorder %s141, %s142
      %p154 = scmp.eq.s32.totalorder %s27, 1
      %p155 = por %p153, %p154
      %p157 = scmp.ne.s32.totalorder %s142, %s156
      %p158 = scmp.eq.s32.totalorder %s27, 0
      %p159 = por %p157, %p158
      %s161 = sadd.s32 %s160, 1
      %p164 = scmp.eq.s32.totalorder %s21, 1
      %p165 = scmp.ne.s32.totalorder %s160, %s162
      %p166 = scmp.eq.s32.totalorder %s21, 0
      %p167 = por %p165, %p166
      %p168 = scmp.ne.s32.totalorder %s160, %s162
      %p169 = scmp.eq.s32.totalorder %s26, 1
      %p170 = por %p168, %p169
      %p171 = scmp.ne.s32.totalorder %s162, %s163
      %p172 = scmp.eq.s32.totalorder %s26, 0
      %p173 = por %p171, %p172
      %p174 = scmp.ne.s32.totalorder %s162, %s163
      %p175 = scmp.eq.s32.totalorder %s27, 1
      %p176 = por %p174, %p175
      %p178 = scmp.ne.s32.totalorder %s163, %s177
      %p179 = scmp.eq.s32.totalorder %s27, 0
      %p180 = por %p178, %p179
      %s181 = ssub.s32 %s21, %s28
      %p182 = scmp.eq.s32.totalorder %s181, 0
      %s184 = sadd.s32 %s183, 1
      %s185 = scalar_select %p182, %s183, %s184
      %p188 = pneg %p182
      %p189 = scmp.eq.s32.totalorder %s21, 1
      %p190 = por %p188, %p189
      %p191 = scmp.ne.s32.totalorder %s183, %s186
      %p192 = scmp.eq.s32.totalorder %s21, 0
      %p193 = por %p191, %p192
      %p194 = scmp.ne.s32.totalorder %s183, %s186
      %p195 = scmp.eq.s32.totalorder %s26, 1
      %p196 = por %p194, %p195
      %p197 = scmp.ne.s32.totalorder %s186, %s187
      %p198 = scmp.eq.s32.totalorder %s26, 0
      %p199 = por %p197, %p198
      %p200 = scmp.ne.s32.totalorder %s186, %s187
      %p201 = scmp.eq.s32.totalorder %s27, 1
      %p202 = por %p200, %p201
      %p204 = scmp.ne.s32.totalorder %s187, %s203
      %p205 = scmp.eq.s32.totalorder %s27, 0
      %p206 = por %p204, %p205
      %s207 = ssub.s32 %s21, %s28
      %p208 = scmp.eq.s32.totalorder %s207, 0
      %s210 = sadd.s32 %s209, 1
      %s211 = scalar_select %p208, %s209, %s210
      %p214 = pneg %p208
      %p215 = scmp.eq.s32.totalorder %s21, 1
      %p216 = por %p214, %p215
      %p217 = scmp.ne.s32.totalorder %s209, %s212
      %p218 = scmp.eq.s32.totalorder %s21, 0
      %p219 = por %p217, %p218
      %p220 = scmp.ne.s32.totalorder %s209, %s212
      %p221 = scmp.eq.s32.totalorder %s26, 1
      %p222 = por %p220, %p221
      %p223 = scmp.ne.s32.totalorder %s212, %s213
      %p224 = scmp.eq.s32.totalorder %s26, 0
      %p225 = por %p223, %p224
      %p226 = scmp.ne.s32.totalorder %s212, %s213
      %p227 = scmp.eq.s32.totalorder %s27, 1
      %p228 = por %p226, %p227
      %p230 = scmp.ne.s32.totalorder %s213, %s229
      %p231 = scmp.eq.s32.totalorder %s27, 0
      %p232 = por %p230, %p231
      %p233 = scmp.le.s32.totalorder 1, %s21
      %p234 = scmp.lt.s32.totalorder %s21, 3
      %p235 = pnand %p233, %p234
      %p236 = pneg %p235
      // Predicated region
      $region9: #{tpu_custom_call.1} parent=5 // pred_check
        _
      $region10: #{tpu_custom_call.1} parent=5 // pred_check_branch
        %238 = sbr.rel (%p235) target = $region12
      $region11: #{tpu_custom_call.1} parent=5 // pred_region
        %s239 = ssub.s32 %s21, 1
        // Predicated region
        $region13: #{tpu_custom_call.1} parent=11 // pred_check
          %p240 = pneg %p68
        $region14: #{tpu_custom_call.1} parent=11 // pred_check_branch
          %242 = sbr.rel (%p240) target = $region16
        $region15: #{tpu_custom_call.1} parent=11 // pred_region
          _
        $region16: #{tpu_custom_call.1} parent=11 // pred_fallthru
          _
        // Predicated region
        $region17: #{tpu_custom_call.1} parent=11 // pred_check
          %p243 = pneg %p89
        $region18: #{tpu_custom_call.1} parent=11 // pred_check_branch
          %245 = sbr.rel (%p243) target = $region20
        $region19: #{tpu_custom_call.1} parent=11 // pred_region
          _
        $region20: #{tpu_custom_call.1} parent=11 // pred_fallthru
          _
        // Predicated region
        $region21: #{tpu_custom_call.1} parent=11 // pred_check
          %p246 = pneg %p110
        $region22: #{tpu_custom_call.1} parent=11 // pred_check_branch
          %248 = sbr.rel (%p246) target = $region24
        $region23: #{tpu_custom_call.1} parent=11 // pred_region
          _
        $region24: #{tpu_custom_call.1} parent=11 // pred_fallthru
          _
        // Predicated region
        $region25: #{tpu_custom_call.1} parent=11 // pred_check
          %p249 = pneg %p131
        $region26: #{tpu_custom_call.1} parent=11 // pred_check_branch
          %251 = sbr.rel (%p249) target = $region28
        $region27: #{tpu_custom_call.1} parent=11 // pred_region
          _
        $region28: #{tpu_custom_call.1} parent=11 // pred_fallthru
          _
        // Predicated region
        $region29: #{tpu_custom_call.1} parent=11 // pred_check
          %p252 = pneg %p152
        $region30: #{tpu_custom_call.1} parent=11 // pred_check_branch
          %254 = sbr.rel (%p252) target = $region32
        $region31: #{tpu_custom_call.1} parent=11 // pred_region
          _
        $region32: #{tpu_custom_call.1} parent=11 // pred_fallthru
          _
        // Predicated region
        $region33: #{tpu_custom_call.1} parent=11 // pred_check
          %p255 = pneg %p173
        $region34: #{tpu_custom_call.1} parent=11 // pred_check_branch
          %257 = sbr.rel (%p255) target = $region36
        $region35: #{tpu_custom_call.1} parent=11 // pred_region
          _
        $region36: #{tpu_custom_call.1} parent=11 // pred_fallthru
          _
      $region12: #{tpu_custom_call.1} parent=5 // pred_fallthru
        _
      %p258 = scmp.lt.s32.totalorder %s21, 2
      // Predicated region
      $region37: #{tpu_custom_call.1} parent=5 // pred_check
        %p259 = pneg %p258
      $region38: #{tpu_custom_call.1} parent=5 // pred_check_branch
        %261 = sbr.rel (%p259) target = $region40
      $region39: #{tpu_custom_call.1} parent=5 // pred_region
        // Predicated region
        $region41: #{tpu_custom_call.1} parent=39 // pred_check
          %p262 = pneg %p41
        $region42: #{tpu_custom_call.1} parent=39 // pred_check_branch
          %264 = sbr.rel (%p262) target = $region44
        $region43: #{tpu_custom_call.1} parent=39 // pred_region
          %s265 = sand.u32 %s31, 1
          %s266 = sand.u32 %s31, 1
          %s267 = smul.addr %s266, 64
          %s268 = scalar_lea.vmem [#allocation2], %s267
          %s269 = smul.u32 2, %s21
          %s270 = smul.addr %s269, 8
          %s271 = scalar_lea.vmem %s0, %s270
          // Predicated region
          $region45: #{tpu_custom_call.1} parent=43 // pred_check
            _
          $region46: #{tpu_custom_call.1} parent=43 // pred_check_branch
            %273 = sbr.rel (0) target = $region48
          $region47: #{tpu_custom_call.1} parent=43 // pred_region
            // Predicated region
            $region49: #{tpu_custom_call.1} parent=47 // pred_check
              _
            $region50: #{tpu_custom_call.1} parent=47 // pred_check_branch
              %275 = sbr.rel (0) target = $region52
            $region51: #{tpu_custom_call.1} parent=47 // pred_region
              loop: start=0, step=1, limit=1
              $region53: #{tpu_custom_call.1} parent=51 // loop_pre_header
                _
              $region54: #{tpu_custom_call.1} parent=51 // loop_header
                %s277 = sphi 0, %s281
                %p278 = scmp.ge.s32.totalorder %s277, 1
                %s282 = sphi %s271, %s271
                %s283 = sphi %s268, %s268
              $region55: #{tpu_custom_call.1} parent=51 // loop_header_branch
                %280 = sbr.rel (%p278) target = $region59
              $region56: #{tpu_custom_call.1} parent=51 // loop_body
                %v284 = vld [vmem:[%s282] sm:$0xff]
                %285 = vst [vmem:[%s283] sm:$0xff] %v284
                %v286 = vld [vmem:[%s282 + $0x8] sm:$0xff]
                %287 = vst [vmem:[%s283 + $0x8] sm:$0xff] %v286
                %v288 = vld [vmem:[%s282 + $0x20] sm:$0xff]
                %289 = vst [vmem:[%s283 + $0x10] sm:$0xff] %v288
                %v290 = vld [vmem:[%s282 + $0x28] sm:$0xff]
                %291 = vst [vmem:[%s283 + $0x18] sm:$0xff] %v290
                %v292 = vld [vmem:[%s282 + $0x40] sm:$0xff]
                %293 = vst [vmem:[%s283 + $0x20] sm:$0xff] %v292
                %v294 = vld [vmem:[%s282 + $0x48] sm:$0xff]
                %295 = vst [vmem:[%s283 + $0x28] sm:$0xff] %v294
                %v296 = vld [vmem:[%s282 + $0x60] sm:$0xff]
                %297 = vst [vmem:[%s283 + $0x30] sm:$0xff] %v296
                %v298 = vld [vmem:[%s282 + $0x68] sm:$0xff]
                %299 = vst [vmem:[%s283 + $0x38] sm:$0xff] %v298
              $region57: #{tpu_custom_call.1} parent=51 // loop_footer
                %s281 = sadd.s32 1, %s277
              $region58: #{tpu_custom_call.1} parent=51 // loop_footer_branch
                %276 = sbr.rel target = $region54
              $region59: #{tpu_custom_call.1} parent=51 // loop_exit
                _
            $region52: #{tpu_custom_call.1} parent=47 // pred_fallthru
              _
            // Predicated region
            $region60: #{tpu_custom_call.1} parent=47 // pred_check
              _
            $region61: #{tpu_custom_call.1} parent=47 // pred_check_branch
              %301 = sbr.rel target = $region63
            $region62: #{tpu_custom_call.1} parent=47 // pred_region
              _
            $region63: #{tpu_custom_call.1} parent=47 // pred_fallthru
              _
          $region48: #{tpu_custom_call.1} parent=43 // pred_fallthru
            _
          %302 = vnop
        $region44: #{tpu_custom_call.1} parent=39 // pred_fallthru
          _
      $region40: #{tpu_custom_call.1} parent=5 // pred_fallthru
        _
      %p303 = scmp.le.s32.totalorder 1, %s21
      %p304 = scmp.lt.s32.totalorder %s21, 3
      %p305 = pnand %p303, %p304
      %p306 = pneg %p305
      // Predicated region
      $region64: #{tpu_custom_call.1} parent=5 // pred_check
        _
      $region65: #{tpu_custom_call.1} parent=5 // pred_check_branch
        %308 = sbr.rel (%p305) target = $region67
      $region66: #{tpu_custom_call.1} parent=5 // pred_region
        %s309 = ssub.s32 %s21, 1
        %s310 = sand.u32 %s34, 1
        %s311 = sand.u32 %s34, 1
        %s312 = smul.addr %s311, 64
        %s313 = scalar_lea.vmem [#allocation2], %s312
        // Predicated region
        $region68: #{tpu_custom_call.1} parent=66 // pred_check
          %p314 = pneg %p47
        $region69: #{tpu_custom_call.1} parent=66 // pred_check_branch
          %316 = sbr.rel (%p314) target = $region71
        $region70: #{tpu_custom_call.1} parent=66 // pred_region
          _
        $region71: #{tpu_custom_call.1} parent=66 // pred_fallthru
          _
        %s317 = sand.u32 %s34, 1
        %s318 = sand.u32 %s34, 1
        %s319 = smul.addr %s318, 64
        %s320 = scalar_lea.vmem [#allocation2], %s319
        %p321 = pneg %p47
        %p322 = pneg %p44
        %p323 = pneg %p68
        %p324 = pneg %p65
        %p325 = pneg %p89
        %p326 = pneg %p86
        %p327 = pneg %p110
        %p328 = pneg %p107
        %p329 = pneg %p131
        %p330 = pneg %p128
        %p331 = pneg %p152
        %p332 = pneg %p149
        %p333 = pneg %p173
        %p334 = pneg %p170
        %p335 = pneg %p199
        %p336 = pneg %p196
        %s337 = sand.u32 %s186, 1
        %s338 = scalar_lea.sflag [#allocation4], %s337
        %s339 = sand.u32 %s186, 1
        %s340 = smul.addr %s339, 64
        %s341 = scalar_lea.vmem [#allocation3], %s340
        %p342 = pneg %p225
        %p343 = pneg %p222
        %s344 = sand.u32 %s212, 1
        %s345 = scalar_lea.sflag [#allocation6], %s344
        %s346 = sand.u32 %s212, 1
        %s347 = smul.addr %s346, 2
        %s348 = scalar_lea.vmem [#allocation5], %s347
        %s349 = smul.u32 2, %s26
        %s350 = smul.u32 2, %s26
        %s351 = smul.u32 2, %s26
        %v352 = vld [vmem:[%s313] sm:$0xff]
        %v353 = vld [vmem:[%s313 + $0x8] sm:$0xff]
        %v354 = vld [vmem:[%s313 + $0x10] sm:$0xff]
        %v355 = vld [vmem:[%s313 + $0x18] sm:$0xff]
        %v356 = vld [vmem:[%s313 + $0x20] sm:$0xff]
        %v357 = vld [vmem:[%s313 + $0x28] sm:$0xff]
        %v358 = vld [vmem:[%s313 + $0x30] sm:$0xff]
        %v359 = vld [vmem:[%s313 + $0x38] sm:$0xff]
        %v360 = vld [vmem:[%s1] sm:$0xff]
        %v361 = vld [vmem:[%s1 + $0x8] sm:$0xff]
        %v362 = vld [vmem:[%s1 + $0x10] sm:$0xff]
        %v363 = vld [vmem:[%s1 + $0x18] sm:$0xff]
        %v364 = vld [vmem:[%s2] sm:$0xff]
        %v365 = vld [vmem:[%s2 + $0x8] sm:$0xff]
        %v366 = vld [vmem:[%s2 + $0x10] sm:$0xff]
        %v367 = vld [vmem:[%s2 + $0x18] sm:$0xff]
        %369 = vset.pattern.permute.xlu0 0
        %370 = vperm.xlu0 %369, %v364
        %v371 = vpop.permute.xlu0 %370
        %374 = vset.pattern.permute.xlu0 0
        %375 = vperm.xlu0 %374, %v365
        %v376 = vpop.permute.xlu0 %375
        %379 = vset.pattern.permute.xlu0 0
        %380 = vperm.xlu0 %379, %v366
        %v381 = vpop.permute.xlu0 %380
        %384 = vset.pattern.permute.xlu0 0
        %385 = vperm.xlu0 %384, %v367
        %v386 = vpop.permute.xlu0 %385
        %vm388 = vcmask 130048
        %v390 = vsel %vm388, %v360, 0
        %v393 = vsel %vm388, %v361, 0
        %v396 = vsel %vm388, %v362, 0
        %v399 = vsel %vm388, %v363, 0
        %401 = vmatprep.subr.mxu0 0.0
        %402 = vmatpush1.msra.mxu0 0.0
        %403 = vmatprep.subr.mxu0 0.0
        %404 = vmatpush1.msra.mxu0 0.0
        %405 = vmatprep.subr.mxu0 0.0
        %406 = vmatpush1.msra.mxu0 0.0
        %407 = vmatprep.subr.mxu0 0.0
        %408 = vmatpush1.msra.mxu0 0.0
        %409 = vmatprep.subr.mxu0 0.0
        %410 = vmatpush1.msra.mxu0 0.0
        %411 = vmatprep.subr.mxu0 0.0
        %412 = vmatpush1.msra.mxu0 0.0
        %413 = vmatprep.subr.mxu0 0.0
        %414 = vmatpush1.msra.mxu0 0.0
        %415 = vmatprep.subr.mxu0 0.0
        %416 = vmatpush1.msra.mxu0 0.0
        %417 = vmatprep.subr.mxu0 0.0
        %418 = vmatpush1.msra.mxu0 0.0
        %419 = vmatprep.subr.mxu0 0.0
        %420 = vmatpush1.msra.mxu0 0.0
        %421 = vmatprep.subr.mxu0 0.0
        %422 = vmatpush1.msra.mxu0 0.0
        %423 = vmatprep.subr.mxu0 0.0
        %424 = vmatpush1.msra.mxu0 0.0
        %425 = vmatprep.subr.mxu0 0.0
        %426 = vmatpush1.msra.mxu0 0.0
        %427 = vmatprep.subr.mxu0 0.0
        %428 = vmatpush1.msra.mxu0 0.0
        %429 = vmatprep.subr.mxu0 %v359
        %430 = vmatpush1.msra.mxu0 %v358
        %431 = vmatprep.subr.mxu0 %v357
        %432 = vmatpush1.msra.mxu0 %v356
        %433 = vmatprep.subr.mxu0 0.0
        %434 = vmatpush2.msra.mxu0 0.0
        %435 = vmatprep.subr.mxu0 0.0
        %436 = vmatpush2.msra.mxu0 0.0
        %437 = vmatprep.subr.mxu0 0.0
        %438 = vmatpush2.msra.mxu0 0.0
        %439 = vmatprep.subr.mxu0 0.0
        %440 = vmatpush2.msra.mxu0 0.0
        %441 = vmatprep.subr.mxu0 0.0
        %442 = vmatpush2.msra.mxu0 0.0
        %443 = vmatprep.subr.mxu0 0.0
        %444 = vmatpush2.msra.mxu0 0.0
        %445 = vmatprep.subr.mxu0 0.0
        %446 = vmatpush2.msra.mxu0 0.0
        %447 = vmatprep.subr.mxu0 0.0
        %448 = vmatpush2.msra.mxu0 0.0
        %449 = vmatprep.subr.mxu0 0.0
        %450 = vmatpush2.msra.mxu0 0.0
        %451 = vmatprep.subr.mxu0 0.0
        %452 = vmatpush2.msra.mxu0 0.0
        %453 = vmatprep.subr.mxu0 0.0
        %454 = vmatpush2.msra.mxu0 0.0
        %455 = vmatprep.subr.mxu0 0.0
        %456 = vmatpush2.msra.mxu0 0.0
        %457 = vmatprep.subr.mxu0 0.0
        %458 = vmatpush2.msra.mxu0 0.0
        %459 = vmatprep.subr.mxu0 0.0
        %460 = vmatpush2.msra.mxu0 0.0
        %461 = vmatprep.subr.mxu0 0.0
        %462 = vmatpush2.msra.mxu0 0.0
        %463 = vmatprep.subr.mxu0 0.0
        %464 = vmatpush2.msra.mxu0 0.0
        %465 = vmatprep.mubr.f32.mxu0 0.0
        %466 = vmatmul.mubr.f32.gmra.mxu0 %v390
        %v467 = vpop.f32.mrf.mxu0
        %v468 = vadd.f32 %v371, %v467
        %v469 = vpop.f32.mrf.mxu0
        %v470 = vadd.f32 %v371, %v469
        %471 = vmatprep.mubr.f32.mxu0 0.0
        %472 = vmatmul.mubr.f32.gmra.mxu0 %v393
        %v473 = vpop.f32.mrf.mxu0
        %v474 = vadd.f32 %v376, %v473
        %v475 = vpop.f32.mrf.mxu0
        %v476 = vadd.f32 %v376, %v475
        %477 = vmatprep.mubr.f32.mxu0 0.0
        %478 = vmatmul.mubr.f32.gmra.mxu0 %v396
        %v479 = vpop.f32.mrf.mxu0
        %v480 = vadd.f32 %v381, %v479
        %v481 = vpop.f32.mrf.mxu0
        %v482 = vadd.f32 %v381, %v481
        %483 = vmatprep.mubr.f32.mxu0 0.0
        %484 = vmatmul.mubr.f32.gmra.mxu0 %v399
        %v485 = vpop.f32.mrf.mxu0
        %v486 = vadd.f32 %v386, %v485
        %v487 = vpop.f32.mrf.mxu0
        %v488 = vadd.f32 %v386, %v487
        %489 = vdwg.mxu0
        %v490 = vmax.f32 %v468, 0.0
        %v491 = vmax.f32 %v470, 0.0
        %v492 = vmax.f32 %v474, 0.0
        %v493 = vmax.f32 %v476, 0.0
        %v494 = vmax.f32 %v480, 0.0
        %v495 = vmax.f32 %v482, 0.0
        %v496 = vmax.f32 %v486, 0.0
        %v497 = vmax.f32 %v488, 0.0
        %v498 = vld [vmem:[%s3] sm:$0xff]
        %v499 = vld [vmem:[%s3 + $0x8] sm:$0xff]
        %v500 = vld [vmem:[%s4] sm:$0xff]
        %v501 = vld [vmem:[%s4 + $0x8] sm:$0xff]
        %503 = vset.pattern.permute.xlu0 0
        %504 = vperm.xlu0 %503, %v500
        %v505 = vpop.permute.xlu0 %504
        %508 = vset.pattern.permute.xlu0 0
        %509 = vperm.xlu0 %508, %v501
        %v510 = vpop.permute.xlu0 %509
        %vm512 = vcmask 261120
        %v514 = vsel %vm512, %v498, 0
        %v517 = vsel %vm512, %v499, 0
        %519 = vmatprep.subr.mxu0 0.0
        %520 = vmatpush1.msra.mxu0 0.0
        %521 = vmatprep.subr.mxu0 0.0
        %522 = vmatpush1.msra.mxu0 0.0
        %523 = vmatprep.subr.mxu0 0.0
        %524 = vmatpush1.msra.mxu0 0.0
        %525 = vmatprep.subr.mxu0 0.0
        %526 = vmatpush1.msra.mxu0 0.0
        %527 = vmatprep.subr.mxu0 0.0
        %528 = vmatpush1.msra.mxu0 0.0
        %529 = vmatprep.subr.mxu0 0.0
        %530 = vmatpush1.msra.mxu0 0.0
        %531 = vmatprep.subr.mxu0 0.0
        %532 = vmatpush1.msra.mxu0 0.0
        %533 = vmatprep.subr.mxu0 0.0
        %534 = vmatpush1.msra.mxu0 0.0
        %535 = vmatprep.subr.mxu0 0.0
        %536 = vmatpush1.msra.mxu0 0.0
        %537 = vmatprep.subr.mxu0 0.0
        %538 = vmatpush1.msra.mxu0 0.0
        %539 = vmatprep.subr.mxu0 0.0
        %540 = vmatpush1.msra.mxu0 0.0
        %541 = vmatprep.subr.mxu0 0.0
        %542 = vmatpush1.msra.mxu0 0.0
        %543 = vmatprep.subr.mxu0 %v497
        %544 = vmatpush1.msra.mxu0 %v496
        %545 = vmatprep.subr.mxu0 %v495
        %546 = vmatpush1.msra.mxu0 %v494
        %547 = vmatprep.subr.mxu0 %v493
        %548 = vmatpush1.msra.mxu0 %v492
        %549 = vmatprep.subr.mxu0 %v491
        %550 = vmatpush1.msra.mxu0 %v490
        %551 = vmatprep.subr.mxu0 0.0
        %552 = vmatpush2.msra.mxu0 0.0
        %553 = vmatprep.subr.mxu0 0.0
        %554 = vmatpush2.msra.mxu0 0.0
        %555 = vmatprep.subr.mxu0 0.0
        %556 = vmatpush2.msra.mxu0 0.0
        %557 = vmatprep.subr.mxu0 0.0
        %558 = vmatpush2.msra.mxu0 0.0
        %559 = vmatprep.subr.mxu0 0.0
        %560 = vmatpush2.msra.mxu0 0.0
        %561 = vmatprep.subr.mxu0 0.0
        %562 = vmatpush2.msra.mxu0 0.0
        %563 = vmatprep.subr.mxu0 0.0
        %564 = vmatpush2.msra.mxu0 0.0
        %565 = vmatprep.subr.mxu0 0.0
        %566 = vmatpush2.msra.mxu0 0.0
        %567 = vmatprep.subr.mxu0 0.0
        %568 = vmatpush2.msra.mxu0 0.0
        %569 = vmatprep.subr.mxu0 0.0
        %570 = vmatpush2.msra.mxu0 0.0
        %571 = vmatprep.subr.mxu0 0.0
        %572 = vmatpush2.msra.mxu0 0.0
        %573 = vmatprep.subr.mxu0 0.0
        %574 = vmatpush2.msra.mxu0 0.0
        %575 = vmatprep.subr.mxu0 0.0
        %576 = vmatpush2.msra.mxu0 0.0
        %577 = vmatprep.subr.mxu0 0.0
        %578 = vmatpush2.msra.mxu0 0.0
        %579 = vmatprep.subr.mxu0 0.0
        %580 = vmatpush2.msra.mxu0 0.0
        %581 = vmatprep.subr.mxu0 0.0
        %582 = vmatpush2.msra.mxu0 0.0
        %583 = vmatprep.mubr.f32.mxu0 0.0
        %584 = vmatmul.mubr.f32.gmra.mxu0 %v514
        %v585 = vpop.f32.mrf.mxu0
        %v586 = vadd.f32 %v505, %v585
        %v587 = vpop.f32.mrf.mxu0
        %v588 = vadd.f32 %v505, %v587
        %589 = vmatprep.mubr.f32.mxu0 0.0
        %590 = vmatmul.mubr.f32.gmra.mxu0 %v517
        %v591 = vpop.f32.mrf.mxu0
        %v592 = vadd.f32 %v510, %v591
        %v593 = vpop.f32.mrf.mxu0
        %v594 = vadd.f32 %v510, %v593
        %595 = vdwg.mxu0
        %v596 = vtanh.pop %v586
        %v597 = vtanh.pop %v588
        %v598 = vtanh.pop %v592
        %v599 = vtanh.pop %v594
        %v600 = vmul.f32 %v596, 2.0
        %v601 = vmul.f32 %v597, 2.0
        %v602 = vmul.f32 %v598, 2.0
        %v603 = vmul.f32 %v599, 2.0
        %v604 = vld [vmem:[%s5] sm:$0xff]
        %v605 = vld [vmem:[%s5 + $0x8] sm:$0xff]
        %v606 = vld [vmem:[%s6] sm:$0xff]
        %v607 = vld [vmem:[%s6 + $0x8] sm:$0xff]
        %609 = vset.pattern.permute.xlu0 0
        %610 = vperm.xlu0 %609, %v606
        %v611 = vpop.permute.xlu0 %610
        %614 = vset.pattern.permute.xlu0 0
        %615 = vperm.xlu0 %614, %v607
        %v616 = vpop.permute.xlu0 %615
        %v619 = vsel %vm512, %v604, 0
        %v622 = vsel %vm512, %v605, 0
        %624 = vmatprep.subr.mxu0 0.0
        %625 = vmatpush1.msra.mxu0 0.0
        %626 = vmatprep.subr.mxu0 0.0
        %627 = vmatpush1.msra.mxu0 0.0
        %628 = vmatprep.subr.mxu0 0.0
        %629 = vmatpush1.msra.mxu0 0.0
        %630 = vmatprep.subr.mxu0 0.0
        %631 = vmatpush1.msra.mxu0 0.0
        %632 = vmatprep.subr.mxu0 0.0
        %633 = vmatpush1.msra.mxu0 0.0
        %634 = vmatprep.subr.mxu0 0.0
        %635 = vmatpush1.msra.mxu0 0.0
        %636 = vmatprep.subr.mxu0 0.0
        %637 = vmatpush1.msra.mxu0 0.0
        %638 = vmatprep.subr.mxu0 0.0
        %639 = vmatpush1.msra.mxu0 0.0
        %640 = vmatprep.subr.mxu0 0.0
        %641 = vmatpush1.msra.mxu0 0.0
        %642 = vmatprep.subr.mxu0 0.0
        %643 = vmatpush1.msra.mxu0 0.0
        %644 = vmatprep.subr.mxu0 0.0
        %645 = vmatpush1.msra.mxu0 0.0
        %646 = vmatprep.subr.mxu0 0.0
        %647 = vmatpush1.msra.mxu0 0.0
        %648 = vmatprep.subr.mxu0 %v497
        %649 = vmatpush1.msra.mxu0 %v496
        %650 = vmatprep.subr.mxu0 %v495
        %651 = vmatpush1.msra.mxu0 %v494
        %652 = vmatprep.subr.mxu0 %v493
        %653 = vmatpush1.msra.mxu0 %v492
        %654 = vmatprep.subr.mxu0 %v491
        %655 = vmatpush1.msra.mxu0 %v490
        %656 = vmatprep.subr.mxu0 0.0
        %657 = vmatpush2.msra.mxu0 0.0
        %658 = vmatprep.subr.mxu0 0.0
        %659 = vmatpush2.msra.mxu0 0.0
        %660 = vmatprep.subr.mxu0 0.0
        %661 = vmatpush2.msra.mxu0 0.0
        %662 = vmatprep.subr.mxu0 0.0
        %663 = vmatpush2.msra.mxu0 0.0
        %664 = vmatprep.subr.mxu0 0.0
        %665 = vmatpush2.msra.mxu0 0.0
        %666 = vmatprep.subr.mxu0 0.0
        %667 = vmatpush2.msra.mxu0 0.0
        %668 = vmatprep.subr.mxu0 0.0
        %669 = vmatpush2.msra.mxu0 0.0
        %670 = vmatprep.subr.mxu0 0.0
        %671 = vmatpush2.msra.mxu0 0.0
        %672 = vmatprep.subr.mxu0 0.0
        %673 = vmatpush2.msra.mxu0 0.0
        %674 = vmatprep.subr.mxu0 0.0
        %675 = vmatpush2.msra.mxu0 0.0
        %676 = vmatprep.subr.mxu0 0.0
        %677 = vmatpush2.msra.mxu0 0.0
        %678 = vmatprep.subr.mxu0 0.0
        %679 = vmatpush2.msra.mxu0 0.0
        %680 = vmatprep.subr.mxu0 0.0
        %681 = vmatpush2.msra.mxu0 0.0
        %682 = vmatprep.subr.mxu0 0.0
        %683 = vmatpush2.msra.mxu0 0.0
        %684 = vmatprep.subr.mxu0 0.0
        %685 = vmatpush2.msra.mxu0 0.0
        %686 = vmatprep.subr.mxu0 0.0
        %687 = vmatpush2.msra.mxu0 0.0
        %688 = vmatprep.mubr.f32.mxu0 0.0
        %689 = vmatmul.mubr.f32.gmra.mxu0 %v619
        %v690 = vpop.f32.mrf.mxu0
        %v691 = vadd.f32 %v611, %v690
        %v692 = vpop.f32.mrf.mxu0
        %v693 = vadd.f32 %v611, %v692
        %694 = vmatprep.mubr.f32.mxu0 0.0
        %695 = vmatmul.mubr.f32.gmra.mxu0 %v622
        %v696 = vpop.f32.mrf.mxu0
        %v697 = vadd.f32 %v616, %v696
        %v698 = vpop.f32.mrf.mxu0
        %v699 = vadd.f32 %v616, %v698
        %700 = vdwg.mxu0
        %v701 = vmul.f32 %v600, 1.442695
        %v702 = vpow.pop %v701
        %v703 = vmul.f32 %v601, 1.442695
        %v704 = vpow.pop %v703
        %v705 = vmul.f32 %v602, 1.442695
        %v706 = vpow.pop %v705
        %v707 = vmul.f32 %v603, 1.442695
        %v708 = vpow.pop %v707
        %v709 = vmul.f32 %v352, %v702
        %v710 = vmul.f32 %v353, %v704
        %v711 = vmul.f32 %v354, %v706
        %v712 = vmul.f32 %v355, %v708
        %v713 = vadd.f32 %v709, %v691
        %v714 = vadd.f32 %v710, %v693
        %v715 = vadd.f32 %v711, %v697
        %v716 = vadd.f32 %v712, %v699
        %v717 = vadd.f32 %v600, %v602
        %v718 = vrot.slane %v717, 4
        %v719 = vadd.f32 %v717, %v718
        %v720 = vrot.slane %v719, 2
        %v721 = vadd.f32 %v719, %v720
        %v722 = vrot.slane %v721, 1
        %v723 = vadd.f32 %v721, %v722
        %v724 = vadd.f32 %v601, %v603
        %v725 = vrot.slane %v724, 4
        %v726 = vadd.f32 %v724, %v725
        %v727 = vrot.slane %v726, 2
        %v728 = vadd.f32 %v726, %v727
        %v729 = vrot.slane %v728, 1
        %v730 = vadd.f32 %v728, %v729
        %v731 = vadd.f32 %v723, 0.0
        %v732 = vadd.f32 %v730, 0.0
        %s733 = scalar_lea.vmem %s1, 32
        %v734 = vld [vmem:[%s733] sm:$0xff]
        %v735 = vld [vmem:[%s733 + $0x8] sm:$0xff]
        %v736 = vld [vmem:[%s733 + $0x10] sm:$0xff]
        %v737 = vld [vmem:[%s733 + $0x18] sm:$0xff]
        %s738 = scalar_lea.vmem %s2, 32
        %v739 = vld [vmem:[%s738] sm:$0xff]
        %v740 = vld [vmem:[%s738 + $0x8] sm:$0xff]
        %v741 = vld [vmem:[%s738 + $0x10] sm:$0xff]
        %v742 = vld [vmem:[%s738 + $0x18] sm:$0xff]
        %744 = vset.pattern.permute.xlu0 0
        %745 = vperm.xlu0 %744, %v739
        %v746 = vpop.permute.xlu0 %745
        %749 = vset.pattern.permute.xlu0 0
        %750 = vperm.xlu0 %749, %v740
        %v751 = vpop.permute.xlu0 %750
        %754 = vset.pattern.permute.xlu0 0
        %755 = vperm.xlu0 %754, %v741
        %v756 = vpop.permute.xlu0 %755
        %759 = vset.pattern.permute.xlu0 0
        %760 = vperm.xlu0 %759, %v742
        %v761 = vpop.permute.xlu0 %760
        %v764 = vsel %vm388, %v734, 0
        %v767 = vsel %vm388, %v735, 0
        %v770 = vsel %vm388, %v736, 0
        %v773 = vsel %vm388, %v737, 0
        %775 = vmatprep.subr.mxu0 0.0
        %776 = vmatpush1.msra.mxu0 0.0
        %777 = vmatprep.subr.mxu0 0.0
        %778 = vmatpush1.msra.mxu0 0.0
        %779 = vmatprep.subr.mxu0 0.0
        %780 = vmatpush1.msra.mxu0 0.0
        %781 = vmatprep.subr.mxu0 0.0
        %782 = vmatpush1.msra.mxu0 0.0
        %783 = vmatprep.subr.mxu0 0.0
        %784 = vmatpush1.msra.mxu0 0.0
        %785 = vmatprep.subr.mxu0 0.0
        %786 = vmatpush1.msra.mxu0 0.0
        %787 = vmatprep.subr.mxu0 0.0
        %788 = vmatpush1.msra.mxu0 0.0
        %789 = vmatprep.subr.mxu0 0.0
        %790 = vmatpush1.msra.mxu0 0.0
        %791 = vmatprep.subr.mxu0 0.0
        %792 = vmatpush1.msra.mxu0 0.0
        %793 = vmatprep.subr.mxu0 0.0
        %794 = vmatpush1.msra.mxu0 0.0
        %795 = vmatprep.subr.mxu0 0.0
        %796 = vmatpush1.msra.mxu0 0.0
        %797 = vmatprep.subr.mxu0 0.0
        %798 = vmatpush1.msra.mxu0 0.0
        %799 = vmatprep.subr.mxu0 0.0
        %800 = vmatpush1.msra.mxu0 0.0
        %801 = vmatprep.subr.mxu0 0.0
        %802 = vmatpush1.msra.mxu0 0.0
        %803 = vmatprep.subr.mxu0 %v716
        %804 = vmatpush1.msra.mxu0 %v715
        %805 = vmatprep.subr.mxu0 %v714
        %806 = vmatpush1.msra.mxu0 %v713
        %807 = vmatprep.subr.mxu0 0.0
        %808 = vmatpush2.msra.mxu0 0.0
        %809 = vmatprep.subr.mxu0 0.0
        %810 = vmatpush2.msra.mxu0 0.0
        %811 = vmatprep.subr.mxu0 0.0
        %812 = vmatpush2.msra.mxu0 0.0
        %813 = vmatprep.subr.mxu0 0.0
        %814 = vmatpush2.msra.mxu0 0.0
        %815 = vmatprep.subr.mxu0 0.0
        %816 = vmatpush2.msra.mxu0 0.0
        %817 = vmatprep.subr.mxu0 0.0
        %818 = vmatpush2.msra.mxu0 0.0
        %819 = vmatprep.subr.mxu0 0.0
        %820 = vmatpush2.msra.mxu0 0.0
        %821 = vmatprep.subr.mxu0 0.0
        %822 = vmatpush2.msra.mxu0 0.0
        %823 = vmatprep.subr.mxu0 0.0
        %824 = vmatpush2.msra.mxu0 0.0
        %825 = vmatprep.subr.mxu0 0.0
        %826 = vmatpush2.msra.mxu0 0.0
        %827 = vmatprep.subr.mxu0 0.0
        %828 = vmatpush2.msra.mxu0 0.0
        %829 = vmatprep.subr.mxu0 0.0
        %830 = vmatpush2.msra.mxu0 0.0
        %831 = vmatprep.subr.mxu0 0.0
        %832 = vmatpush2.msra.mxu0 0.0
        %833 = vmatprep.subr.mxu0 0.0
        %834 = vmatpush2.msra.mxu0 0.0
        %835 = vmatprep.subr.mxu0 0.0
        %836 = vmatpush2.msra.mxu0 0.0
        %837 = vmatprep.subr.mxu0 0.0
        %838 = vmatpush2.msra.mxu0 0.0
        %839 = vmatprep.mubr.f32.mxu0 0.0
        %840 = vmatmul.mubr.f32.gmra.mxu0 %v764
        %v841 = vpop.f32.mrf.mxu0
        %v842 = vadd.f32 %v746, %v841
        %v843 = vpop.f32.mrf.mxu0
        %v844 = vadd.f32 %v746, %v843
        %845 = vmatprep.mubr.f32.mxu0 0.0
        %846 = vmatmul.mubr.f32.gmra.mxu0 %v767
        %v847 = vpop.f32.mrf.mxu0
        %v848 = vadd.f32 %v751, %v847
        %v849 = vpop.f32.mrf.mxu0
        %v850 = vadd.f32 %v751, %v849
        %851 = vmatprep.mubr.f32.mxu0 0.0
        %852 = vmatmul.mubr.f32.gmra.mxu0 %v770
        %v853 = vpop.f32.mrf.mxu0
        %v854 = vadd.f32 %v756, %v853
        %v855 = vpop.f32.mrf.mxu0
        %v856 = vadd.f32 %v756, %v855
        %857 = vmatprep.mubr.f32.mxu0 0.0
        %858 = vmatmul.mubr.f32.gmra.mxu0 %v773
        %v859 = vpop.f32.mrf.mxu0
        %v860 = vadd.f32 %v761, %v859
        %v861 = vpop.f32.mrf.mxu0
        %v862 = vadd.f32 %v761, %v861
        %863 = vdwg.mxu0
        %v864 = vmax.f32 %v842, 0.0
        %v865 = vmax.f32 %v844, 0.0
        %v866 = vmax.f32 %v848, 0.0
        %v867 = vmax.f32 %v850, 0.0
        %v868 = vmax.f32 %v854, 0.0
        %v869 = vmax.f32 %v856, 0.0
        %v870 = vmax.f32 %v860, 0.0
        %v871 = vmax.f32 %v862, 0.0
        %s872 = scalar_lea.vmem %s3, 16
        %v873 = vld [vmem:[%s872] sm:$0xff]
        %v874 = vld [vmem:[%s872 + $0x8] sm:$0xff]
        %s875 = scalar_lea.vmem %s4, 16
        %v876 = vld [vmem:[%s875] sm:$0xff]
        %v877 = vld [vmem:[%s875 + $0x8] sm:$0xff]
        %879 = vset.pattern.permute.xlu0 0
        %880 = vperm.xlu0 %879, %v876
        %v881 = vpop.permute.xlu0 %880
        %884 = vset.pattern.permute.xlu0 0
        %885 = vperm.xlu0 %884, %v877
        %v886 = vpop.permute.xlu0 %885
        %v889 = vsel %vm512, %v873, 0
        %v892 = vsel %vm512, %v874, 0
        %894 = vmatprep.subr.mxu0 0.0
        %895 = vmatpush1.msra.mxu0 0.0
        %896 = vmatprep.subr.mxu0 0.0
        %897 = vmatpush1.msra.mxu0 0.0
        %898 = vmatprep.subr.mxu0 0.0
        %899 = vmatpush1.msra.mxu0 0.0
        %900 = vmatprep.subr.mxu0 0.0
        %901 = vmatpush1.msra.mxu0 0.0
        %902 = vmatprep.subr.mxu0 0.0
        %903 = vmatpush1.msra.mxu0 0.0
        %904 = vmatprep.subr.mxu0 0.0
        %905 = vmatpush1.msra.mxu0 0.0
        %906 = vmatprep.subr.mxu0 0.0
        %907 = vmatpush1.msra.mxu0 0.0
        %908 = vmatprep.subr.mxu0 0.0
        %909 = vmatpush1.msra.mxu0 0.0
        %910 = vmatprep.subr.mxu0 0.0
        %911 = vmatpush1.msra.mxu0 0.0
        %912 = vmatprep.subr.mxu0 0.0
        %913 = vmatpush1.msra.mxu0 0.0
        %914 = vmatprep.subr.mxu0 0.0
        %915 = vmatpush1.msra.mxu0 0.0
        %916 = vmatprep.subr.mxu0 0.0
        %917 = vmatpush1.msra.mxu0 0.0
        %918 = vmatprep.subr.mxu0 %v871
        %919 = vmatpush1.msra.mxu0 %v870
        %920 = vmatprep.subr.mxu0 %v869
        %921 = vmatpush1.msra.mxu0 %v868
        %922 = vmatprep.subr.mxu0 %v867
        %923 = vmatpush1.msra.mxu0 %v866
        %924 = vmatprep.subr.mxu0 %v865
        %925 = vmatpush1.msra.mxu0 %v864
        %926 = vmatprep.subr.mxu0 0.0
        %927 = vmatpush2.msra.mxu0 0.0
        %928 = vmatprep.subr.mxu0 0.0
        %929 = vmatpush2.msra.mxu0 0.0
        %930 = vmatprep.subr.mxu0 0.0
        %931 = vmatpush2.msra.mxu0 0.0
        %932 = vmatprep.subr.mxu0 0.0
        %933 = vmatpush2.msra.mxu0 0.0
        %934 = vmatprep.subr.mxu0 0.0
        %935 = vmatpush2.msra.mxu0 0.0
        %936 = vmatprep.subr.mxu0 0.0
        %937 = vmatpush2.msra.mxu0 0.0
        %938 = vmatprep.subr.mxu0 0.0
        %939 = vmatpush2.msra.mxu0 0.0
        %940 = vmatprep.subr.mxu0 0.0
        %941 = vmatpush2.msra.mxu0 0.0
        %942 = vmatprep.subr.mxu0 0.0
        %943 = vmatpush2.msra.mxu0 0.0
        %944 = vmatprep.subr.mxu0 0.0
        %945 = vmatpush2.msra.mxu0 0.0
        %946 = vmatprep.subr.mxu0 0.0
        %947 = vmatpush2.msra.mxu0 0.0
        %948 = vmatprep.subr.mxu0 0.0
        %949 = vmatpush2.msra.mxu0 0.0
        %950 = vmatprep.subr.mxu0 0.0
        %951 = vmatpush2.msra.mxu0 0.0
        %952 = vmatprep.subr.mxu0 0.0
        %953 = vmatpush2.msra.mxu0 0.0
        %954 = vmatprep.subr.mxu0 0.0
        %955 = vmatpush2.msra.mxu0 0.0
        %956 = vmatprep.subr.mxu0 0.0
        %957 = vmatpush2.msra.mxu0 0.0
        %958 = vmatprep.mubr.f32.mxu0 0.0
        %959 = vmatmul.mubr.f32.gmra.mxu0 %v889
        %v960 = vpop.f32.mrf.mxu0
        %v961 = vadd.f32 %v881, %v960
        %v962 = vpop.f32.mrf.mxu0
        %v963 = vadd.f32 %v881, %v962
        %964 = vmatprep.mubr.f32.mxu0 0.0
        %965 = vmatmul.mubr.f32.gmra.mxu0 %v892
        %v966 = vpop.f32.mrf.mxu0
        %v967 = vadd.f32 %v886, %v966
        %v968 = vpop.f32.mrf.mxu0
        %v969 = vadd.f32 %v886, %v968
        %970 = vdwg.mxu0
        %v971 = vtanh.pop %v961
        %v972 = vtanh.pop %v963
        %v973 = vtanh.pop %v967
        %v974 = vtanh.pop %v969
        %v975 = vmul.f32 %v971, 2.0
        %v976 = vmul.f32 %v972, 2.0
        %v977 = vmul.f32 %v973, 2.0
        %v978 = vmul.f32 %v974, 2.0
        %s979 = scalar_lea.vmem %s5, 16
        %v980 = vld [vmem:[%s979] sm:$0xff]
        %v981 = vld [vmem:[%s979 + $0x8] sm:$0xff]
        %s982 = scalar_lea.vmem %s6, 16
        %v983 = vld [vmem:[%s982] sm:$0xff]
        %v984 = vld [vmem:[%s982 + $0x8] sm:$0xff]
        %986 = vset.pattern.permute.xlu0 0
        %987 = vperm.xlu0 %986, %v983
        %v988 = vpop.permute.xlu0 %987
        %991 = vset.pattern.permute.xlu0 0
        %992 = vperm.xlu0 %991, %v984
        %v993 = vpop.permute.xlu0 %992
        %v996 = vsel %vm512, %v980, 0
        %v999 = vsel %vm512, %v981, 0
        %1001 = vmatprep.subr.mxu0 0.0
        %1002 = vmatpush1.msra.mxu0 0.0
        %1003 = vmatprep.subr.mxu0 0.0
        %1004 = vmatpush1.msra.mxu0 0.0
        %1005 = vmatprep.subr.mxu0 0.0
        %1006 = vmatpush1.msra.mxu0 0.0
        %1007 = vmatprep.subr.mxu0 0.0
        %1008 = vmatpush1.msra.mxu0 0.0
        %1009 = vmatprep.subr.mxu0 0.0
        %1010 = vmatpush1.msra.mxu0 0.0
        %1011 = vmatprep.subr.mxu0 0.0
        %1012 = vmatpush1.msra.mxu0 0.0
        %1013 = vmatprep.subr.mxu0 0.0
        %1014 = vmatpush1.msra.mxu0 0.0
        %1015 = vmatprep.subr.mxu0 0.0
        %1016 = vmatpush1.msra.mxu0 0.0
        %1017 = vmatprep.subr.mxu0 0.0
        %1018 = vmatpush1.msra.mxu0 0.0
        %1019 = vmatprep.subr.mxu0 0.0
        %1020 = vmatpush1.msra.mxu0 0.0
        %1021 = vmatprep.subr.mxu0 0.0
        %1022 = vmatpush1.msra.mxu0 0.0
        %1023 = vmatprep.subr.mxu0 0.0
        %1024 = vmatpush1.msra.mxu0 0.0
        %1025 = vmatprep.subr.mxu0 %v871
        %1026 = vmatpush1.msra.mxu0 %v870
        %1027 = vmatprep.subr.mxu0 %v869
        %1028 = vmatpush1.msra.mxu0 %v868
        %1029 = vmatprep.subr.mxu0 %v867
        %1030 = vmatpush1.msra.mxu0 %v866
        %1031 = vmatprep.subr.mxu0 %v865
        %1032 = vmatpush1.msra.mxu0 %v864
        %1033 = vmatprep.subr.mxu0 0.0
        %1034 = vmatpush2.msra.mxu0 0.0
        %1035 = vmatprep.subr.mxu0 0.0
        %1036 = vmatpush2.msra.mxu0 0.0
        %1037 = vmatprep.subr.mxu0 0.0
        %1038 = vmatpush2.msra.mxu0 0.0
        %1039 = vmatprep.subr.mxu0 0.0
        %1040 = vmatpush2.msra.mxu0 0.0
        %1041 = vmatprep.subr.mxu0 0.0
        %1042 = vmatpush2.msra.mxu0 0.0
        %1043 = vmatprep.subr.mxu0 0.0
        %1044 = vmatpush2.msra.mxu0 0.0
        %1045 = vmatprep.subr.mxu0 0.0
        %1046 = vmatpush2.msra.mxu0 0.0
        %1047 = vmatprep.subr.mxu0 0.0
        %1048 = vmatpush2.msra.mxu0 0.0
        %1049 = vmatprep.subr.mxu0 0.0
        %1050 = vmatpush2.msra.mxu0 0.0
        %1051 = vmatprep.subr.mxu0 0.0
        %1052 = vmatpush2.msra.mxu0 0.0
        %1053 = vmatprep.subr.mxu0 0.0
        %1054 = vmatpush2.msra.mxu0 0.0
        %1055 = vmatprep.subr.mxu0 0.0
        %1056 = vmatpush2.msra.mxu0 0.0
        %1057 = vmatprep.subr.mxu0 0.0
        %1058 = vmatpush2.msra.mxu0 0.0
        %1059 = vmatprep.subr.mxu0 0.0
        %1060 = vmatpush2.msra.mxu0 0.0
        %1061 = vmatprep.subr.mxu0 0.0
        %1062 = vmatpush2.msra.mxu0 0.0
        %1063 = vmatprep.subr.mxu0 0.0
        %1064 = vmatpush2.msra.mxu0 0.0
        %1065 = vmatprep.mubr.f32.mxu0 0.0
        %1066 = vmatmul.mubr.f32.gmra.mxu0 %v996
        %v1067 = vpop.f32.mrf.mxu0
        %v1068 = vadd.f32 %v988, %v1067
        %v1069 = vpop.f32.mrf.mxu0
        %v1070 = vadd.f32 %v988, %v1069
        %1071 = vmatprep.mubr.f32.mxu0 0.0
        %1072 = vmatmul.mubr.f32.gmra.mxu0 %v999
        %v1073 = vpop.f32.mrf.mxu0
        %v1074 = vadd.f32 %v993, %v1073
        %v1075 = vpop.f32.mrf.mxu0
        %v1076 = vadd.f32 %v993, %v1075
        %1077 = vdwg.mxu0
        %v1078 = vmul.f32 %v975, 1.442695
        %v1079 = vpow.pop %v1078
        %v1080 = vmul.f32 %v976, 1.442695
        %v1081 = vpow.pop %v1080
        %v1082 = vmul.f32 %v977, 1.442695
        %v1083 = vpow.pop %v1082
        %v1084 = vmul.f32 %v978, 1.442695
        %v1085 = vpow.pop %v1084
        %v1086 = vmul.f32 %v356, %v1079
        %v1087 = vmul.f32 %v357, %v1081
        %v1088 = vmul.f32 %v358, %v1083
        %v1089 = vmul.f32 %v359, %v1085
        %v1090 = vadd.f32 %v1086, %v1068
        %v1091 = vadd.f32 %v1087, %v1070
        %v1092 = vadd.f32 %v1088, %v1074
        %v1093 = vadd.f32 %v1089, %v1076
        %v1094 = vadd.f32 %v975, %v977
        %v1095 = vrot.slane %v1094, 4
        %v1096 = vadd.f32 %v1094, %v1095
        %v1097 = vrot.slane %v1096, 2
        %v1098 = vadd.f32 %v1096, %v1097
        %v1099 = vrot.slane %v1098, 1
        %v1100 = vadd.f32 %v1098, %v1099
        %v1101 = vadd.f32 %v976, %v978
        %v1102 = vrot.slane %v1101, 4
        %v1103 = vadd.f32 %v1101, %v1102
        %v1104 = vrot.slane %v1103, 2
        %v1105 = vadd.f32 %v1103, %v1104
        %v1106 = vrot.slane %v1105, 1
        %v1107 = vadd.f32 %v1105, %v1106
        %v1108 = vadd.f32 %v731, %v1100
        %v1109 = vadd.f32 %v732, %v1107
        %s1110 = scalar_lea.vmem %s1, 64
        %v1111 = vld [vmem:[%s1110] sm:$0xff]
        %v1112 = vld [vmem:[%s1110 + $0x8] sm:$0xff]
        %v1113 = vld [vmem:[%s1110 + $0x10] sm:$0xff]
        %v1114 = vld [vmem:[%s1110 + $0x18] sm:$0xff]
        %s1115 = scalar_lea.vmem %s2, 64
        %v1116 = vld [vmem:[%s1115] sm:$0xff]
        %v1117 = vld [vmem:[%s1115 + $0x8] sm:$0xff]
        %v1118 = vld [vmem:[%s1115 + $0x10] sm:$0xff]
        %v1119 = vld [vmem:[%s1115 + $0x18] sm:$0xff]
        %1121 = vset.pattern.permute.xlu0 0
        %1122 = vperm.xlu0 %1121, %v1116
        %v1123 = vpop.permute.xlu0 %1122
        %1126 = vset.pattern.permute.xlu0 0
        %1127 = vperm.xlu0 %1126, %v1117
        %v1128 = vpop.permute.xlu0 %1127
        %1131 = vset.pattern.permute.xlu0 0
        %1132 = vperm.xlu0 %1131, %v1118
        %v1133 = vpop.permute.xlu0 %1132
        %1136 = vset.pattern.permute.xlu0 0
        %1137 = vperm.xlu0 %1136, %v1119
        %v1138 = vpop.permute.xlu0 %1137
        %v1141 = vsel %vm388, %v1111, 0
        %v1144 = vsel %vm388, %v1112, 0
        %v1147 = vsel %vm388, %v1113, 0
        %v1150 = vsel %vm388, %v1114, 0
        %1152 = vmatprep.subr.mxu0 0.0
        %1153 = vmatpush1.msra.mxu0 0.0
        %1154 = vmatprep.subr.mxu0 0.0
        %1155 = vmatpush1.msra.mxu0 0.0
        %1156 = vmatprep.subr.mxu0 0.0
        %1157 = vmatpush1.msra.mxu0 0.0
        %1158 = vmatprep.subr.mxu0 0.0
        %1159 = vmatpush1.msra.mxu0 0.0
        %1160 = vmatprep.subr.mxu0 0.0
        %1161 = vmatpush1.msra.mxu0 0.0
        %1162 = vmatprep.subr.mxu0 0.0
        %1163 = vmatpush1.msra.mxu0 0.0
        %1164 = vmatprep.subr.mxu0 0.0
        %1165 = vmatpush1.msra.mxu0 0.0
        %1166 = vmatprep.subr.mxu0 0.0
        %1167 = vmatpush1.msra.mxu0 0.0
        %1168 = vmatprep.subr.mxu0 0.0
        %1169 = vmatpush1.msra.mxu0 0.0
        %1170 = vmatprep.subr.mxu0 0.0
        %1171 = vmatpush1.msra.mxu0 0.0
        %1172 = vmatprep.subr.mxu0 0.0
        %1173 = vmatpush1.msra.mxu0 0.0
        %1174 = vmatprep.subr.mxu0 0.0
        %1175 = vmatpush1.msra.mxu0 0.0
        %1176 = vmatprep.subr.mxu0 0.0
        %1177 = vmatpush1.msra.mxu0 0.0
        %1178 = vmatprep.subr.mxu0 0.0
        %1179 = vmatpush1.msra.mxu0 0.0
        %1180 = vmatprep.subr.mxu0 %v1093
        %1181 = vmatpush1.msra.mxu0 %v1092
        %1182 = vmatprep.subr.mxu0 %v1091
        %1183 = vmatpush1.msra.mxu0 %v1090
        %1184 = vmatprep.subr.mxu0 0.0
        %1185 = vmatpush2.msra.mxu0 0.0
        %1186 = vmatprep.subr.mxu0 0.0
        %1187 = vmatpush2.msra.mxu0 0.0
        %1188 = vmatprep.subr.mxu0 0.0
        %1189 = vmatpush2.msra.mxu0 0.0
        %1190 = vmatprep.subr.mxu0 0.0
        %1191 = vmatpush2.msra.mxu0 0.0
        %1192 = vmatprep.subr.mxu0 0.0
        %1193 = vmatpush2.msra.mxu0 0.0
        %1194 = vmatprep.subr.mxu0 0.0
        %1195 = vmatpush2.msra.mxu0 0.0
        %1196 = vmatprep.subr.mxu0 0.0
        %1197 = vmatpush2.msra.mxu0 0.0
        %1198 = vmatprep.subr.mxu0 0.0
        %1199 = vmatpush2.msra.mxu0 0.0
        %1200 = vmatprep.subr.mxu0 0.0
        %1201 = vmatpush2.msra.mxu0 0.0
        %1202 = vmatprep.subr.mxu0 0.0
        %1203 = vmatpush2.msra.mxu0 0.0
        %1204 = vmatprep.subr.mxu0 0.0
        %1205 = vmatpush2.msra.mxu0 0.0
        %1206 = vmatprep.subr.mxu0 0.0
        %1207 = vmatpush2.msra.mxu0 0.0
        %1208 = vmatprep.subr.mxu0 0.0
        %1209 = vmatpush2.msra.mxu0 0.0
        %1210 = vmatprep.subr.mxu0 0.0
        %1211 = vmatpush2.msra.mxu0 0.0
        %1212 = vmatprep.subr.mxu0 0.0
        %1213 = vmatpush2.msra.mxu0 0.0
        %1214 = vmatprep.subr.mxu0 0.0
        %1215 = vmatpush2.msra.mxu0 0.0
        %1216 = vmatprep.mubr.f32.mxu0 0.0
        %1217 = vmatmul.mubr.f32.gmra.mxu0 %v1141
        %v1218 = vpop.f32.mrf.mxu0
        %v1219 = vadd.f32 %v1123, %v1218
        %v1220 = vpop.f32.mrf.mxu0
        %v1221 = vadd.f32 %v1123, %v1220
        %1222 = vmatprep.mubr.f32.mxu0 0.0
        %1223 = vmatmul.mubr.f32.gmra.mxu0 %v1144
        %v1224 = vpop.f32.mrf.mxu0
        %v1225 = vadd.f32 %v1128, %v1224
        %v1226 = vpop.f32.mrf.mxu0
        %v1227 = vadd.f32 %v1128, %v1226
        %1228 = vmatprep.mubr.f32.mxu0 0.0
        %1229 = vmatmul.mubr.f32.gmra.mxu0 %v1147
        %v1230 = vpop.f32.mrf.mxu0
        %v1231 = vadd.f32 %v1133, %v1230
        %v1232 = vpop.f32.mrf.mxu0
        %v1233 = vadd.f32 %v1133, %v1232
        %1234 = vmatprep.mubr.f32.mxu0 0.0
        %1235 = vmatmul.mubr.f32.gmra.mxu0 %v1150
        %v1236 = vpop.f32.mrf.mxu0
        %v1237 = vadd.f32 %v1138, %v1236
        %v1238 = vpop.f32.mrf.mxu0
        %v1239 = vadd.f32 %v1138, %v1238
        %1240 = vdwg.mxu0
        %v1241 = vmax.f32 %v1219, 0.0
        %v1242 = vmax.f32 %v1221, 0.0
        %v1243 = vmax.f32 %v1225, 0.0
        %v1244 = vmax.f32 %v1227, 0.0
        %v1245 = vmax.f32 %v1231, 0.0
        %v1246 = vmax.f32 %v1233, 0.0
        %v1247 = vmax.f32 %v1237, 0.0
        %v1248 = vmax.f32 %v1239, 0.0
        %s1249 = scalar_lea.vmem %s3, 32
        %v1250 = vld [vmem:[%s1249] sm:$0xff]
        %v1251 = vld [vmem:[%s1249 + $0x8] sm:$0xff]
        %s1252 = scalar_lea.vmem %s4, 32
        %v1253 = vld [vmem:[%s1252] sm:$0xff]
        %v1254 = vld [vmem:[%s1252 + $0x8] sm:$0xff]
        %1256 = vset.pattern.permute.xlu0 0
        %1257 = vperm.xlu0 %1256, %v1253
        %v1258 = vpop.permute.xlu0 %1257
        %1261 = vset.pattern.permute.xlu0 0
        %1262 = vperm.xlu0 %1261, %v1254
        %v1263 = vpop.permute.xlu0 %1262
        %v1266 = vsel %vm512, %v1250, 0
        %v1269 = vsel %vm512, %v1251, 0
        %1271 = vmatprep.subr.mxu0 0.0
        %1272 = vmatpush1.msra.mxu0 0.0
        %1273 = vmatprep.subr.mxu0 0.0
        %1274 = vmatpush1.msra.mxu0 0.0
        %1275 = vmatprep.subr.mxu0 0.0
        %1276 = vmatpush1.msra.mxu0 0.0
        %1277 = vmatprep.subr.mxu0 0.0
        %1278 = vmatpush1.msra.mxu0 0.0
        %1279 = vmatprep.subr.mxu0 0.0
        %1280 = vmatpush1.msra.mxu0 0.0
        %1281 = vmatprep.subr.mxu0 0.0
        %1282 = vmatpush1.msra.mxu0 0.0
        %1283 = vmatprep.subr.mxu0 0.0
        %1284 = vmatpush1.msra.mxu0 0.0
        %1285 = vmatprep.subr.mxu0 0.0
        %1286 = vmatpush1.msra.mxu0 0.0
        %1287 = vmatprep.subr.mxu0 0.0
        %1288 = vmatpush1.msra.mxu0 0.0
        %1289 = vmatprep.subr.mxu0 0.0
        %1290 = vmatpush1.msra.mxu0 0.0
        %1291 = vmatprep.subr.mxu0 0.0
        %1292 = vmatpush1.msra.mxu0 0.0
        %1293 = vmatprep.subr.mxu0 0.0
        %1294 = vmatpush1.msra.mxu0 0.0
        %1295 = vmatprep.subr.mxu0 %v1248
        %1296 = vmatpush1.msra.mxu0 %v1247
        %1297 = vmatprep.subr.mxu0 %v1246
        %1298 = vmatpush1.msra.mxu0 %v1245
        %1299 = vmatprep.subr.mxu0 %v1244
        %1300 = vmatpush1.msra.mxu0 %v1243
        %1301 = vmatprep.subr.mxu0 %v1242
        %1302 = vmatpush1.msra.mxu0 %v1241
        %1303 = vmatprep.subr.mxu0 0.0
        %1304 = vmatpush2.msra.mxu0 0.0
        %1305 = vmatprep.subr.mxu0 0.0
        %1306 = vmatpush2.msra.mxu0 0.0
        %1307 = vmatprep.subr.mxu0 0.0
        %1308 = vmatpush2.msra.mxu0 0.0
        %1309 = vmatprep.subr.mxu0 0.0
        %1310 = vmatpush2.msra.mxu0 0.0
        %1311 = vmatprep.subr.mxu0 0.0
        %1312 = vmatpush2.msra.mxu0 0.0
        %1313 = vmatprep.subr.mxu0 0.0
        %1314 = vmatpush2.msra.mxu0 0.0
        %1315 = vmatprep.subr.mxu0 0.0
        %1316 = vmatpush2.msra.mxu0 0.0
        %1317 = vmatprep.subr.mxu0 0.0
        %1318 = vmatpush2.msra.mxu0 0.0
        %1319 = vmatprep.subr.mxu0 0.0
        %1320 = vmatpush2.msra.mxu0 0.0
        %1321 = vmatprep.subr.mxu0 0.0
        %1322 = vmatpush2.msra.mxu0 0.0
        %1323 = vmatprep.subr.mxu0 0.0
        %1324 = vmatpush2.msra.mxu0 0.0
        %1325 = vmatprep.subr.mxu0 0.0
        %1326 = vmatpush2.msra.mxu0 0.0
        %1327 = vmatprep.subr.mxu0 0.0
        %1328 = vmatpush2.msra.mxu0 0.0
        %1329 = vmatprep.subr.mxu0 0.0
        %1330 = vmatpush2.msra.mxu0 0.0
        %1331 = vmatprep.subr.mxu0 0.0
        %1332 = vmatpush2.msra.mxu0 0.0
        %1333 = vmatprep.subr.mxu0 0.0
        %1334 = vmatpush2.msra.mxu0 0.0
        %1335 = vmatprep.mubr.f32.mxu0 0.0
        %1336 = vmatmul.mubr.f32.gmra.mxu0 %v1266
        %v1337 = vpop.f32.mrf.mxu0
        %v1338 = vadd.f32 %v1258, %v1337
        %v1339 = vpop.f32.mrf.mxu0
        %v1340 = vadd.f32 %v1258, %v1339
        %1341 = vmatprep.mubr.f32.mxu0 0.0
        %1342 = vmatmul.mubr.f32.gmra.mxu0 %v1269
        %v1343 = vpop.f32.mrf.mxu0
        %v1344 = vadd.f32 %v1263, %v1343
        %v1345 = vpop.f32.mrf.mxu0
        %v1346 = vadd.f32 %v1263, %v1345
        %1347 = vdwg.mxu0
        %v1348 = vtanh.pop %v1338
        %v1349 = vtanh.pop %v1340
        %v1350 = vtanh.pop %v1344
        %v1351 = vtanh.pop %v1346
        %v1352 = vmul.f32 %v1348, 2.0
        %v1353 = vmul.f32 %v1349, 2.0
        %v1354 = vmul.f32 %v1350, 2.0
        %v1355 = vmul.f32 %v1351, 2.0
        %s1356 = scalar_lea.vmem %s5, 32
        %v1357 = vld [vmem:[%s1356] sm:$0xff]
        %v1358 = vld [vmem:[%s1356 + $0x8] sm:$0xff]
        %s1359 = scalar_lea.vmem %s6, 32
        %v1360 = vld [vmem:[%s1359] sm:$0xff]
        %v1361 = vld [vmem:[%s1359 + $0x8] sm:$0xff]
        %1363 = vset.pattern.permute.xlu0 0
        %1364 = vperm.xlu0 %1363, %v1360
        %v1365 = vpop.permute.xlu0 %1364
        %1368 = vset.pattern.permute.xlu0 0
        %1369 = vperm.xlu0 %1368, %v1361
        %v1370 = vpop.permute.xlu0 %1369
        %v1373 = vsel %vm512, %v1357, 0
        %v1376 = vsel %vm512, %v1358, 0
        %1378 = vmatprep.subr.mxu0 0.0
        %1379 = vmatpush1.msra.mxu0 0.0
        %1380 = vmatprep.subr.mxu0 0.0
        %1381 = vmatpush1.msra.mxu0 0.0
        %1382 = vmatprep.subr.mxu0 0.0
        %1383 = vmatpush1.msra.mxu0 0.0
        %1384 = vmatprep.subr.mxu0 0.0
        %1385 = vmatpush1.msra.mxu0 0.0
        %1386 = vmatprep.subr.mxu0 0.0
        %1387 = vmatpush1.msra.mxu0 0.0
        %1388 = vmatprep.subr.mxu0 0.0
        %1389 = vmatpush1.msra.mxu0 0.0
        %1390 = vmatprep.subr.mxu0 0.0
        %1391 = vmatpush1.msra.mxu0 0.0
        %1392 = vmatprep.subr.mxu0 0.0
        %1393 = vmatpush1.msra.mxu0 0.0
        %1394 = vmatprep.subr.mxu0 0.0
        %1395 = vmatpush1.msra.mxu0 0.0
        %1396 = vmatprep.subr.mxu0 0.0
        %1397 = vmatpush1.msra.mxu0 0.0
        %1398 = vmatprep.subr.mxu0 0.0
        %1399 = vmatpush1.msra.mxu0 0.0
        %1400 = vmatprep.subr.mxu0 0.0
        %1401 = vmatpush1.msra.mxu0 0.0
        %1402 = vmatprep.subr.mxu0 %v1248
        %1403 = vmatpush1.msra.mxu0 %v1247
        %1404 = vmatprep.subr.mxu0 %v1246
        %1405 = vmatpush1.msra.mxu0 %v1245
        %1406 = vmatprep.subr.mxu0 %v1244
        %1407 = vmatpush1.msra.mxu0 %v1243
        %1408 = vmatprep.subr.mxu0 %v1242
        %1409 = vmatpush1.msra.mxu0 %v1241
        %1410 = vmatprep.subr.mxu0 0.0
        %1411 = vmatpush2.msra.mxu0 0.0
        %1412 = vmatprep.subr.mxu0 0.0
        %1413 = vmatpush2.msra.mxu0 0.0
        %1414 = vmatprep.subr.mxu0 0.0
        %1415 = vmatpush2.msra.mxu0 0.0
        %1416 = vmatprep.subr.mxu0 0.0
        %1417 = vmatpush2.msra.mxu0 0.0
        %1418 = vmatprep.subr.mxu0 0.0
        %1419 = vmatpush2.msra.mxu0 0.0
        %1420 = vmatprep.subr.mxu0 0.0
        %1421 = vmatpush2.msra.mxu0 0.0
        %1422 = vmatprep.subr.mxu0 0.0
        %1423 = vmatpush2.msra.mxu0 0.0
        %1424 = vmatprep.subr.mxu0 0.0
        %1425 = vmatpush2.msra.mxu0 0.0
        %1426 = vmatprep.subr.mxu0 0.0
        %1427 = vmatpush2.msra.mxu0 0.0
        %1428 = vmatprep.subr.mxu0 0.0
        %1429 = vmatpush2.msra.mxu0 0.0
        %1430 = vmatprep.subr.mxu0 0.0
        %1431 = vmatpush2.msra.mxu0 0.0
        %1432 = vmatprep.subr.mxu0 0.0
        %1433 = vmatpush2.msra.mxu0 0.0
        %1434 = vmatprep.subr.mxu0 0.0
        %1435 = vmatpush2.msra.mxu0 0.0
        %1436 = vmatprep.subr.mxu0 0.0
        %1437 = vmatpush2.msra.mxu0 0.0
        %1438 = vmatprep.subr.mxu0 0.0
        %1439 = vmatpush2.msra.mxu0 0.0
        %1440 = vmatprep.subr.mxu0 0.0
        %1441 = vmatpush2.msra.mxu0 0.0
        %1442 = vmatprep.mubr.f32.mxu0 0.0
        %1443 = vmatmul.mubr.f32.gmra.mxu0 %v1373
        %v1444 = vpop.f32.mrf.mxu0
        %v1445 = vadd.f32 %v1365, %v1444
        %v1446 = vpop.f32.mrf.mxu0
        %v1447 = vadd.f32 %v1365, %v1446
        %1448 = vmatprep.mubr.f32.mxu0 0.0
        %1449 = vmatmul.mubr.f32.gmra.mxu0 %v1376
        %v1450 = vpop.f32.mrf.mxu0
        %v1451 = vadd.f32 %v1370, %v1450
        %v1452 = vpop.f32.mrf.mxu0
        %v1453 = vadd.f32 %v1370, %v1452
        %1454 = vdwg.mxu0
        %v1455 = vmul.f32 %v1352, 1.442695
        %v1456 = vpow.pop %v1455
        %v1457 = vmul.f32 %v1353, 1.442695
        %v1458 = vpow.pop %v1457
        %v1459 = vmul.f32 %v1354, 1.442695
        %v1460 = vpow.pop %v1459
        %v1461 = vmul.f32 %v1355, 1.442695
        %v1462 = vpow.pop %v1461
        %v1463 = vmul.f32 %v713, %v1456
        %v1464 = vmul.f32 %v714, %v1458
        %v1465 = vmul.f32 %v715, %v1460
        %v1466 = vmul.f32 %v716, %v1462
        %v1467 = vadd.f32 %v1463, %v1445
        %v1468 = vadd.f32 %v1464, %v1447
        %v1469 = vadd.f32 %v1465, %v1451
        %v1470 = vadd.f32 %v1466, %v1453
        %v1471 = vadd.f32 %v1352, %v1354
        %v1472 = vrot.slane %v1471, 4
        %v1473 = vadd.f32 %v1471, %v1472
        %v1474 = vrot.slane %v1473, 2
        %v1475 = vadd.f32 %v1473, %v1474
        %v1476 = vrot.slane %v1475, 1
        %v1477 = vadd.f32 %v1475, %v1476
        %v1478 = vadd.f32 %v1353, %v1355
        %v1479 = vrot.slane %v1478, 4
        %v1480 = vadd.f32 %v1478, %v1479
        %v1481 = vrot.slane %v1480, 2
        %v1482 = vadd.f32 %v1480, %v1481
        %v1483 = vrot.slane %v1482, 1
        %v1484 = vadd.f32 %v1482, %v1483
        %v1485 = vadd.f32 %v1108, %v1477
        %v1486 = vadd.f32 %v1109, %v1484
        %s1487 = scalar_lea.vmem %s1, 96
        %v1488 = vld [vmem:[%s1487] sm:$0xff]
        %v1489 = vld [vmem:[%s1487 + $0x8] sm:$0xff]
        %v1490 = vld [vmem:[%s1487 + $0x10] sm:$0xff]
        %v1491 = vld [vmem:[%s1487 + $0x18] sm:$0xff]
        %s1492 = scalar_lea.vmem %s2, 96
        %v1493 = vld [vmem:[%s1492] sm:$0xff]
        %v1494 = vld [vmem:[%s1492 + $0x8] sm:$0xff]
        %v1495 = vld [vmem:[%s1492 + $0x10] sm:$0xff]
        %v1496 = vld [vmem:[%s1492 + $0x18] sm:$0xff]
        %1498 = vset.pattern.permute.xlu0 0
        %1499 = vperm.xlu0 %1498, %v1493
        %v1500 = vpop.permute.xlu0 %1499
        %1503 = vset.pattern.permute.xlu0 0
        %1504 = vperm.xlu0 %1503, %v1494
        %v1505 = vpop.permute.xlu0 %1504
        %1508 = vset.pattern.permute.xlu0 0
        %1509 = vperm.xlu0 %1508, %v1495
        %v1510 = vpop.permute.xlu0 %1509
        %1513 = vset.pattern.permute.xlu0 0
        %1514 = vperm.xlu0 %1513, %v1496
        %v1515 = vpop.permute.xlu0 %1514
        %v1518 = vsel %vm388, %v1488, 0
        %v1521 = vsel %vm388, %v1489, 0
        %v1524 = vsel %vm388, %v1490, 0
        %v1527 = vsel %vm388, %v1491, 0
        %1529 = vmatprep.subr.mxu0 0.0
        %1530 = vmatpush1.msra.mxu0 0.0
        %1531 = vmatprep.subr.mxu0 0.0
        %1532 = vmatpush1.msra.mxu0 0.0
        %1533 = vmatprep.subr.mxu0 0.0
        %1534 = vmatpush1.msra.mxu0 0.0
        %1535 = vmatprep.subr.mxu0 0.0
        %1536 = vmatpush1.msra.mxu0 0.0
        %1537 = vmatprep.subr.mxu0 0.0
        %1538 = vmatpush1.msra.mxu0 0.0
        %1539 = vmatprep.subr.mxu0 0.0
        %1540 = vmatpush1.msra.mxu0 0.0
        %1541 = vmatprep.subr.mxu0 0.0
        %1542 = vmatpush1.msra.mxu0 0.0
        %1543 = vmatprep.subr.mxu0 0.0
        %1544 = vmatpush1.msra.mxu0 0.0
        %1545 = vmatprep.subr.mxu0 0.0
        %1546 = vmatpush1.msra.mxu0 0.0
        %1547 = vmatprep.subr.mxu0 0.0
        %1548 = vmatpush1.msra.mxu0 0.0
        %1549 = vmatprep.subr.mxu0 0.0
        %1550 = vmatpush1.msra.mxu0 0.0
        %1551 = vmatprep.subr.mxu0 0.0
        %1552 = vmatpush1.msra.mxu0 0.0
        %1553 = vmatprep.subr.mxu0 0.0
        %1554 = vmatpush1.msra.mxu0 0.0
        %1555 = vmatprep.subr.mxu0 0.0
        %1556 = vmatpush1.msra.mxu0 0.0
        %1557 = vmatprep.subr.mxu0 %v1470
        %1558 = vmatpush1.msra.mxu0 %v1469
        %1559 = vmatprep.subr.mxu0 %v1468
        %1560 = vmatpush1.msra.mxu0 %v1467
        %1561 = vmatprep.subr.mxu0 0.0
        %1562 = vmatpush2.msra.mxu0 0.0
        %1563 = vmatprep.subr.mxu0 0.0
        %1564 = vmatpush2.msra.mxu0 0.0
        %1565 = vmatprep.subr.mxu0 0.0
        %1566 = vmatpush2.msra.mxu0 0.0
        %1567 = vmatprep.subr.mxu0 0.0
        %1568 = vmatpush2.msra.mxu0 0.0
        %1569 = vmatprep.subr.mxu0 0.0
        %1570 = vmatpush2.msra.mxu0 0.0
        %1571 = vmatprep.subr.mxu0 0.0
        %1572 = vmatpush2.msra.mxu0 0.0
        %1573 = vmatprep.subr.mxu0 0.0
        %1574 = vmatpush2.msra.mxu0 0.0
        %1575 = vmatprep.subr.mxu0 0.0
        %1576 = vmatpush2.msra.mxu0 0.0
        %1577 = vmatprep.subr.mxu0 0.0
        %1578 = vmatpush2.msra.mxu0 0.0
        %1579 = vmatprep.subr.mxu0 0.0
        %1580 = vmatpush2.msra.mxu0 0.0
        %1581 = vmatprep.subr.mxu0 0.0
        %1582 = vmatpush2.msra.mxu0 0.0
        %1583 = vmatprep.subr.mxu0 0.0
        %1584 = vmatpush2.msra.mxu0 0.0
        %1585 = vmatprep.subr.mxu0 0.0
        %1586 = vmatpush2.msra.mxu0 0.0
        %1587 = vmatprep.subr.mxu0 0.0
        %1588 = vmatpush2.msra.mxu0 0.0
        %1589 = vmatprep.subr.mxu0 0.0
        %1590 = vmatpush2.msra.mxu0 0.0
        %1591 = vmatprep.subr.mxu0 0.0
        %1592 = vmatpush2.msra.mxu0 0.0
        %1593 = vmatprep.mubr.f32.mxu0 0.0
        %1594 = vmatmul.mubr.f32.gmra.mxu0 %v1518
        %v1595 = vpop.f32.mrf.mxu0
        %v1596 = vadd.f32 %v1500, %v1595
        %v1597 = vpop.f32.mrf.mxu0
        %v1598 = vadd.f32 %v1500, %v1597
        %1599 = vmatprep.mubr.f32.mxu0 0.0
        %1600 = vmatmul.mubr.f32.gmra.mxu0 %v1521
        %v1601 = vpop.f32.mrf.mxu0
        %v1602 = vadd.f32 %v1505, %v1601
        %v1603 = vpop.f32.mrf.mxu0
        %v1604 = vadd.f32 %v1505, %v1603
        %1605 = vmatprep.mubr.f32.mxu0 0.0
        %1606 = vmatmul.mubr.f32.gmra.mxu0 %v1524
        %v1607 = vpop.f32.mrf.mxu0
        %v1608 = vadd.f32 %v1510, %v1607
        %v1609 = vpop.f32.mrf.mxu0
        %v1610 = vadd.f32 %v1510, %v1609
        %1611 = vmatprep.mubr.f32.mxu0 0.0
        %1612 = vmatmul.mubr.f32.gmra.mxu0 %v1527
        %v1613 = vpop.f32.mrf.mxu0
        %v1614 = vadd.f32 %v1515, %v1613
        %v1615 = vpop.f32.mrf.mxu0
        %v1616 = vadd.f32 %v1515, %v1615
        %1617 = vdwg.mxu0
        %v1618 = vmax.f32 %v1596, 0.0
        %v1619 = vmax.f32 %v1598, 0.0
        %v1620 = vmax.f32 %v1602, 0.0
        %v1621 = vmax.f32 %v1604, 0.0
        %v1622 = vmax.f32 %v1608, 0.0
        %v1623 = vmax.f32 %v1610, 0.0
        %v1624 = vmax.f32 %v1614, 0.0
        %v1625 = vmax.f32 %v1616, 0.0
        %s1626 = scalar_lea.vmem %s3, 48
        %v1627 = vld [vmem:[%s1626] sm:$0xff]
        %v1628 = vld [vmem:[%s1626 + $0x8] sm:$0xff]
        %s1629 = scalar_lea.vmem %s4, 48
        %v1630 = vld [vmem:[%s1629] sm:$0xff]
        %v1631 = vld [vmem:[%s1629 + $0x8] sm:$0xff]
        %1633 = vset.pattern.permute.xlu0 0
        %1634 = vperm.xlu0 %1633, %v1630
        %v1635 = vpop.permute.xlu0 %1634
        %1638 = vset.pattern.permute.xlu0 0
        %1639 = vperm.xlu0 %1638, %v1631
        %v1640 = vpop.permute.xlu0 %1639
        %v1643 = vsel %vm512, %v1627, 0
        %v1646 = vsel %vm512, %v1628, 0
        %1648 = vmatprep.subr.mxu0 0.0
        %1649 = vmatpush1.msra.mxu0 0.0
        %1650 = vmatprep.subr.mxu0 0.0
        %1651 = vmatpush1.msra.mxu0 0.0
        %1652 = vmatprep.subr.mxu0 0.0
        %1653 = vmatpush1.msra.mxu0 0.0
        %1654 = vmatprep.subr.mxu0 0.0
        %1655 = vmatpush1.msra.mxu0 0.0
        %1656 = vmatprep.subr.mxu0 0.0
        %1657 = vmatpush1.msra.mxu0 0.0
        %1658 = vmatprep.subr.mxu0 0.0
        %1659 = vmatpush1.msra.mxu0 0.0
        %1660 = vmatprep.subr.mxu0 0.0
        %1661 = vmatpush1.msra.mxu0 0.0
        %1662 = vmatprep.subr.mxu0 0.0
        %1663 = vmatpush1.msra.mxu0 0.0
        %1664 = vmatprep.subr.mxu0 0.0
        %1665 = vmatpush1.msra.mxu0 0.0
        %1666 = vmatprep.subr.mxu0 0.0
        %1667 = vmatpush1.msra.mxu0 0.0
        %1668 = vmatprep.subr.mxu0 0.0
        %1669 = vmatpush1.msra.mxu0 0.0
        %1670 = vmatprep.subr.mxu0 0.0
        %1671 = vmatpush1.msra.mxu0 0.0
        %1672 = vmatprep.subr.mxu0 %v1625
        %1673 = vmatpush1.msra.mxu0 %v1624
        %1674 = vmatprep.subr.mxu0 %v1623
        %1675 = vmatpush1.msra.mxu0 %v1622
        %1676 = vmatprep.subr.mxu0 %v1621
        %1677 = vmatpush1.msra.mxu0 %v1620
        %1678 = vmatprep.subr.mxu0 %v1619
        %1679 = vmatpush1.msra.mxu0 %v1618
        %1680 = vmatprep.subr.mxu0 0.0
        %1681 = vmatpush2.msra.mxu0 0.0
        %1682 = vmatprep.subr.mxu0 0.0
        %1683 = vmatpush2.msra.mxu0 0.0
        %1684 = vmatprep.subr.mxu0 0.0
        %1685 = vmatpush2.msra.mxu0 0.0
        %1686 = vmatprep.subr.mxu0 0.0
        %1687 = vmatpush2.msra.mxu0 0.0
        %1688 = vmatprep.subr.mxu0 0.0
        %1689 = vmatpush2.msra.mxu0 0.0
        %1690 = vmatprep.subr.mxu0 0.0
        %1691 = vmatpush2.msra.mxu0 0.0
        %1692 = vmatprep.subr.mxu0 0.0
        %1693 = vmatpush2.msra.mxu0 0.0
        %1694 = vmatprep.subr.mxu0 0.0
        %1695 = vmatpush2.msra.mxu0 0.0
        %1696 = vmatprep.subr.mxu0 0.0
        %1697 = vmatpush2.msra.mxu0 0.0
        %1698 = vmatprep.subr.mxu0 0.0
        %1699 = vmatpush2.msra.mxu0 0.0
        %1700 = vmatprep.subr.mxu0 0.0
        %1701 = vmatpush2.msra.mxu0 0.0
        %1702 = vmatprep.subr.mxu0 0.0
        %1703 = vmatpush2.msra.mxu0 0.0
        %1704 = vmatprep.subr.mxu0 0.0
        %1705 = vmatpush2.msra.mxu0 0.0
        %1706 = vmatprep.subr.mxu0 0.0
        %1707 = vmatpush2.msra.mxu0 0.0
        %1708 = vmatprep.subr.mxu0 0.0
        %1709 = vmatpush2.msra.mxu0 0.0
        %1710 = vmatprep.subr.mxu0 0.0
        %1711 = vmatpush2.msra.mxu0 0.0
        %1712 = vmatprep.mubr.f32.mxu0 0.0
        %1713 = vmatmul.mubr.f32.gmra.mxu0 %v1643
        %v1714 = vpop.f32.mrf.mxu0
        %v1715 = vadd.f32 %v1635, %v1714
        %v1716 = vpop.f32.mrf.mxu0
        %v1717 = vadd.f32 %v1635, %v1716
        %1718 = vmatprep.mubr.f32.mxu0 0.0
        %1719 = vmatmul.mubr.f32.gmra.mxu0 %v1646
        %v1720 = vpop.f32.mrf.mxu0
        %v1721 = vadd.f32 %v1640, %v1720
        %v1722 = vpop.f32.mrf.mxu0
        %v1723 = vadd.f32 %v1640, %v1722
        %1724 = vdwg.mxu0
        %v1725 = vtanh.pop %v1715
        %v1726 = vtanh.pop %v1717
        %v1727 = vtanh.pop %v1721
        %v1728 = vtanh.pop %v1723
        %v1729 = vmul.f32 %v1725, 2.0
        %v1730 = vmul.f32 %v1726, 2.0
        %v1731 = vmul.f32 %v1727, 2.0
        %v1732 = vmul.f32 %v1728, 2.0
        %s1733 = scalar_lea.vmem %s5, 48
        %v1734 = vld [vmem:[%s1733] sm:$0xff]
        %v1735 = vld [vmem:[%s1733 + $0x8] sm:$0xff]
        %s1736 = scalar_lea.vmem %s6, 48
        %v1737 = vld [vmem:[%s1736] sm:$0xff]
        %v1738 = vld [vmem:[%s1736 + $0x8] sm:$0xff]
        %1740 = vset.pattern.permute.xlu0 0
        %1741 = vperm.xlu0 %1740, %v1737
        %v1742 = vpop.permute.xlu0 %1741
        %1745 = vset.pattern.permute.xlu0 0
        %1746 = vperm.xlu0 %1745, %v1738
        %v1747 = vpop.permute.xlu0 %1746
        %v1750 = vsel %vm512, %v1734, 0
        %v1753 = vsel %vm512, %v1735, 0
        %1755 = vmatprep.subr.mxu0 0.0
        %1756 = vmatpush1.msra.mxu0 0.0
        %1757 = vmatprep.subr.mxu0 0.0
        %1758 = vmatpush1.msra.mxu0 0.0
        %1759 = vmatprep.subr.mxu0 0.0
        %1760 = vmatpush1.msra.mxu0 0.0
        %1761 = vmatprep.subr.mxu0 0.0
        %1762 = vmatpush1.msra.mxu0 0.0
        %1763 = vmatprep.subr.mxu0 0.0
        %1764 = vmatpush1.msra.mxu0 0.0
        %1765 = vmatprep.subr.mxu0 0.0
        %1766 = vmatpush1.msra.mxu0 0.0
        %1767 = vmatprep.subr.mxu0 0.0
        %1768 = vmatpush1.msra.mxu0 0.0
        %1769 = vmatprep.subr.mxu0 0.0
        %1770 = vmatpush1.msra.mxu0 0.0
        %1771 = vmatprep.subr.mxu0 0.0
        %1772 = vmatpush1.msra.mxu0 0.0
        %1773 = vmatprep.subr.mxu0 0.0
        %1774 = vmatpush1.msra.mxu0 0.0
        %1775 = vmatprep.subr.mxu0 0.0
        %1776 = vmatpush1.msra.mxu0 0.0
        %1777 = vmatprep.subr.mxu0 0.0
        %1778 = vmatpush1.msra.mxu0 0.0
        %1779 = vmatprep.subr.mxu0 %v1625
        %1780 = vmatpush1.msra.mxu0 %v1624
        %1781 = vmatprep.subr.mxu0 %v1623
        %1782 = vmatpush1.msra.mxu0 %v1622
        %1783 = vmatprep.subr.mxu0 %v1621
        %1784 = vmatpush1.msra.mxu0 %v1620
        %1785 = vmatprep.subr.mxu0 %v1619
        %1786 = vmatpush1.msra.mxu0 %v1618
        %1787 = vmatprep.subr.mxu0 0.0
        %1788 = vmatpush2.msra.mxu0 0.0
        %1789 = vmatprep.subr.mxu0 0.0
        %1790 = vmatpush2.msra.mxu0 0.0
        %1791 = vmatprep.subr.mxu0 0.0
        %1792 = vmatpush2.msra.mxu0 0.0
        %1793 = vmatprep.subr.mxu0 0.0
        %1794 = vmatpush2.msra.mxu0 0.0
        %1795 = vmatprep.subr.mxu0 0.0
        %1796 = vmatpush2.msra.mxu0 0.0
        %1797 = vmatprep.subr.mxu0 0.0
        %1798 = vmatpush2.msra.mxu0 0.0
        %1799 = vmatprep.subr.mxu0 0.0
        %1800 = vmatpush2.msra.mxu0 0.0
        %1801 = vmatprep.subr.mxu0 0.0
        %1802 = vmatpush2.msra.mxu0 0.0
        %1803 = vmatprep.subr.mxu0 0.0
        %1804 = vmatpush2.msra.mxu0 0.0
        %1805 = vmatprep.subr.mxu0 0.0
        %1806 = vmatpush2.msra.mxu0 0.0
        %1807 = vmatprep.subr.mxu0 0.0
        %1808 = vmatpush2.msra.mxu0 0.0
        %1809 = vmatprep.subr.mxu0 0.0
        %1810 = vmatpush2.msra.mxu0 0.0
        %1811 = vmatprep.subr.mxu0 0.0
        %1812 = vmatpush2.msra.mxu0 0.0
        %1813 = vmatprep.subr.mxu0 0.0
        %1814 = vmatpush2.msra.mxu0 0.0
        %1815 = vmatprep.subr.mxu0 0.0
        %1816 = vmatpush2.msra.mxu0 0.0
        %1817 = vmatprep.subr.mxu0 0.0
        %1818 = vmatpush2.msra.mxu0 0.0
        %1819 = vmatprep.mubr.f32.mxu0 0.0
        %1820 = vmatmul.mubr.f32.gmra.mxu0 %v1750
        %v1821 = vpop.f32.mrf.mxu0
        %v1822 = vadd.f32 %v1742, %v1821
        %v1823 = vpop.f32.mrf.mxu0
        %v1824 = vadd.f32 %v1742, %v1823
        %1825 = vmatprep.mubr.f32.mxu0 0.0
        %1826 = vmatmul.mubr.f32.gmra.mxu0 %v1753
        %v1827 = vpop.f32.mrf.mxu0
        %v1828 = vadd.f32 %v1747, %v1827
        %v1829 = vpop.f32.mrf.mxu0
        %v1830 = vadd.f32 %v1747, %v1829
        %1831 = vdwg.mxu0
        %v1832 = vmul.f32 %v1729, 1.442695
        %v1833 = vpow.pop %v1832
        %v1834 = vmul.f32 %v1730, 1.442695
        %v1835 = vpow.pop %v1834
        %v1836 = vmul.f32 %v1731, 1.442695
        %v1837 = vpow.pop %v1836
        %v1838 = vmul.f32 %v1732, 1.442695
        %v1839 = vpow.pop %v1838
        %v1840 = vmul.f32 %v1090, %v1833
        %v1841 = vmul.f32 %v1091, %v1835
        %v1842 = vmul.f32 %v1092, %v1837
        %v1843 = vmul.f32 %v1093, %v1839
        %v1844 = vadd.f32 %v1840, %v1822
        %v1845 = vadd.f32 %v1841, %v1824
        %v1846 = vadd.f32 %v1842, %v1828
        %v1847 = vadd.f32 %v1843, %v1830
        %v1848 = vadd.f32 %v1729, %v1731
        %v1849 = vrot.slane %v1848, 4
        %v1850 = vadd.f32 %v1848, %v1849
        %v1851 = vrot.slane %v1850, 2
        %v1852 = vadd.f32 %v1850, %v1851
        %v1853 = vrot.slane %v1852, 1
        %v1854 = vadd.f32 %v1852, %v1853
        %v1855 = vadd.f32 %v1730, %v1732
        %v1856 = vrot.slane %v1855, 4
        %v1857 = vadd.f32 %v1855, %v1856
        %v1858 = vrot.slane %v1857, 2
        %v1859 = vadd.f32 %v1857, %v1858
        %v1860 = vrot.slane %v1859, 1
        %v1861 = vadd.f32 %v1859, %v1860
        %v1862 = vadd.f32 %v1485, %v1854
        %v1863 = vadd.f32 %v1486, %v1861
        %1864 = vst [vmem:[%s341] sm:$0xff] %v1467
        %1865 = vst [vmem:[%s341 + $0x8] sm:$0xff] %v1468
        %1866 = vst [vmem:[%s341 + $0x10] sm:$0xff] %v1469
        %1867 = vst [vmem:[%s341 + $0x18] sm:$0xff] %v1470
        %1868 = vst [vmem:[%s341 + $0x20] sm:$0xff] %v1844
        %1869 = vst [vmem:[%s341 + $0x28] sm:$0xff] %v1845
        %1870 = vst [vmem:[%s341 + $0x30] sm:$0xff] %v1846
        %1871 = vst [vmem:[%s341 + $0x38] sm:$0xff] %v1847
        %v1874 = vcombine.low %v1862, %v1863
        %v1876 = vunpack.c.l.s4 1966171168
        %v1877 = vunpack.c.0.s8 %v1876
        %v1878 = vlaneseq
        %v1879 = vshrl.u32 %v1878, 7
        %v1880 = vsub.s32 %v1877, %v1879
        %v1881 = vrot.slane %v1874, %v1880
        %v1883 = vunpack.c.l.s4 1966171168
        %v1884 = vunpack.c.0.s8 %v1883
        %v1885 = vlaneseq
        %v1886 = vshrl.u32 %v1885, 7
        %v1887 = vsub.s32 %v1884, %v1886
        %v1888 = vrot.slane %v1881, %v1887
        %v1890 = vlaneseq
        %vm1891 = vcmp.ge.s32.totalorder %v1890, 0
        %vm1892 = vcmp.lt.s32.totalorder %v1890, 256
        %vm1893 = vmand %vm1891, %vm1892
        %1894 = vst.msk [vmem:[%s348] sm:$0x3] %vm1893, %v1888
        %s1895 = sand.u32 %s186, 1
        %s1896 = scalar_lea.sflag [#allocation4], %s1895
        %s1897 = sand.u32 %s186, 1
        %s1898 = smul.addr %s1897, 64
        %s1899 = scalar_lea.vmem [#allocation3], %s1898
        %s1900 = sand.u32 %s212, 1
        %s1901 = scalar_lea.sflag [#allocation6], %s1900
        %s1902 = sand.u32 %s212, 1
        %s1903 = smul.addr %s1902, 2
        %s1904 = scalar_lea.vmem [#allocation5], %s1903
        // Predicated region
        $region72: #{tpu_custom_call.1} parent=66 // pred_check
          %p1905 = pneg %p196
        $region73: #{tpu_custom_call.1} parent=66 // pred_check_branch
          %1907 = sbr.rel (%p1905) target = $region75
        $region74: #{tpu_custom_call.1} parent=66 // pred_region
          %s1908 = smul.u32 2, %s26
          %s1910 = ssub.s32 1024, 1024
          %1911 = vsyncadd %s1896, %s1910
          %s1912 = smul.addr %s1908, 128
          %s1913 = scalar_lea.hbm %s7, %s1912
          %s1914 = sshll.u32 %s1899, 4
          %s1915 = int_to_ptr.vmem [resolvable:$true] %s1914
          %1920 = dma.vmem_to_hbm [thread:$0]  %s1915, 1024, %s1913, %s1896, 256, 512, 16
        $region75: #{tpu_custom_call.1} parent=66 // pred_fallthru
          _
        // Predicated region
        $region76: #{tpu_custom_call.1} parent=66 // pred_check
          %p1921 = pneg %p222
        $region77: #{tpu_custom_call.1} parent=66 // pred_check_branch
          %1923 = sbr.rel (%p1921) target = $region79
        $region78: #{tpu_custom_call.1} parent=66 // pred_region
          %s1924 = smul.u32 2, %s26
          %s1926 = ssub.s32 32, 32
          %1927 = vsyncadd %s1901, %s1926
          %s1928 = smul.addr %s1924, 16
          %s1929 = scalar_lea.hbm %s8, %s1928
          %s1931 = sshll.u32 %s1904, 4
          %s1932 = int_to_ptr.vmem [resolvable:$true] %s1931
          %1934 = dma.vmem_to_hbm [thread:$0]  %s1932, 32, %s1929, %s1901
        $region79: #{tpu_custom_call.1} parent=66 // pred_fallthru
          _
      $region67: #{tpu_custom_call.1} parent=5 // pred_fallthru
        _
      %p1935 = scmp.le.s32.totalorder 2, %s21
      // Predicated region
      $region80: #{tpu_custom_call.1} parent=5 // pred_check
        %p1936 = pneg %p1935
      $region81: #{tpu_custom_call.1} parent=5 // pred_check_branch
        %1938 = sbr.rel (%p1936) target = $region83
      $region82: #{tpu_custom_call.1} parent=5 // pred_region
        %s1939 = ssub.s32 %s21, 2
        // Predicated region
        $region84: #{tpu_custom_call.1} parent=82 // pred_check
          %p1940 = pneg %p202
        $region85: #{tpu_custom_call.1} parent=82 // pred_check_branch
          %1942 = sbr.rel (%p1940) target = $region87
        $region86: #{tpu_custom_call.1} parent=82 // pred_region
          %s1943 = sand.u32 %s187, 1
          %s1944 = scalar_lea.sflag [#allocation4], %s1943
          %s1945 = sand.u32 %s187, 1
          %s1946 = smul.addr %s1945, 64
          %s1947 = scalar_lea.vmem [#allocation3], %s1946
          %1948 = dma.done %s1944, 1024
        $region87: #{tpu_custom_call.1} parent=82 // pred_fallthru
          _
        // Predicated region
        $region88: #{tpu_custom_call.1} parent=82 // pred_check
          %p1949 = pneg %p228
        $region89: #{tpu_custom_call.1} parent=82 // pred_check_branch
          %1951 = sbr.rel (%p1949) target = $region91
        $region90: #{tpu_custom_call.1} parent=82 // pred_region
          %s1952 = sand.u32 %s213, 1
          %s1953 = scalar_lea.sflag [#allocation6], %s1952
          %s1954 = sand.u32 %s213, 1
          %s1955 = smul.addr %s1954, 2
          %s1956 = scalar_lea.vmem [#allocation5], %s1955
          %1957 = dma.done %s1953, 32
        $region91: #{tpu_custom_call.1} parent=82 // pred_fallthru
          _
      $region83: #{tpu_custom_call.1} parent=5 // pred_fallthru
        _
    $region6: #{tpu_custom_call.1} parent=1 // loop_footer
      %s25 = sadd.s32 1, %s21
    $region7: #{tpu_custom_call.1} parent=1 // loop_footer_branch
      %20 = sbr.rel target = $region3
    $region8: #{tpu_custom_call.1} parent=1 // loop_exit
      _
    %1958 = vsyncpa [#allocation4], 1
    %s1959 = scalar_lea.sflag [#allocation4], 1
    %1960 = vsyncpa %s1959, 1
    %1961 = vsyncpa [#allocation6], 1
    %s1962 = scalar_lea.sflag [#allocation6], 1
    %1963 = vsyncpa %s1962, 1

</llo_original>
